<compile_context>
chip_gen: v6e
topology: v6e:2x2x1
jax: 0.10.0
libtpu: 0.0.40
codegen_flags: <defaults>
</compile_context>

<pallas_src>
import jax
import jax.numpy as jnp
from jax.experimental import pallas as pl
from jax.experimental.pallas import tpu as pltpu


_LANE = 128  # f32 lane width; batch tiles / output rows are multiples of this.


# ----------------------------------------------------------------------------
# Kernel: full 3-layer MLP on one batch tile per grid step.
# ----------------------------------------------------------------------------
def critic_kernel(x_ref, w1_ref, b1_ref, w2_ref, b2_ref, w3_ref, b3_ref, v_ref):
    # fc1: (TB, S) @ (S, H) -> (TB, H); bf16 MXU inputs (weights pre-cast in the
    # wrapper, x cast per-tile here), f32 accumulation.
    x = x_ref[...].astype(jnp.bfloat16)
    h1 = jnp.tanh(
        jnp.dot(x, w1_ref[...], preferred_element_type=jnp.float32) + b1_ref[...])
    # fc2: (TB, H) @ (H, H) -> (TB, H)
    h2 = jnp.tanh(
        jnp.dot(h1.astype(jnp.bfloat16), w2_ref[...],
                preferred_element_type=jnp.float32) + b2_ref[...])
    # value head: contract the hidden dim of w3 (1, H) against the hidden dim of
    # h2 (TB, H) -> (1, TB).  bf16 operands, f32 accumulation; the (1, TB) row is
    # lane-dense (last dim a multiple of 128) so the store is an unmasked vst and
    # the writeback DMA is contiguous.
    # TODO(synk): check via pl.lower_as_mlir that Mosaic does not emit an XLU
    # transpose of h2 for this contraction; if it does, switch to a transposed
    # pl.dot / multiply+lane-reduce form before scaling batch_tile further.
    v_row = jax.lax.dot_general(
        w3_ref[...], h2.astype(jnp.bfloat16),
        dimension_numbers=(((1,), (1,)), ((), ())),
        preferred_element_type=jnp.float32)
    v_ref[...] = v_row + b3_ref[0]          # b3 scalar lives in SMEM, shape (1,)


# ----------------------------------------------------------------------------
# Wrapper helpers: tiling, padding, VMEM sizing.
# ----------------------------------------------------------------------------
def _round_up(x, m):
    return ((x + m - 1) // m) * m


def _vmem_capacity_bytes():
    """Physical VMEM per core (generation-aware); conservative v7x fallback."""
    try:
        info = pltpu.get_tpu_info()
        cap = getattr(info, "vmem_capacity_bytes", None)
        if cap:
            return int(cap)
    except Exception:
        pass
    return 64 * 1024 * 1024


def _vmem_estimate_bytes(tb, S, H, weight_bufs=2):
    """Rough VMEM footprint of the pipelined kernel for one batch tile."""
    x_tile = 2 * tb * S * 4                            # double-buffered f32 x blocks
    out_tile = 2 * 8 * tb * 4                          # (1, tb) block, sublane-padded
    weights = weight_bufs * (S * H * 2 + H * H * 2     # bf16 w1, w2
                             + 8 * H * 2               # bf16 w3 row (sublane-padded)
                             + 2 * 8 * H * 4)          # f32 b1, b2 (sublane-padded)
    inter = (2 * tb * H * 4                            # h1, h2 in f32
             + tb * H * 2 + tb * S * 2                 # bf16 casts of h1 and x
             + 8 * tb * 4)                             # f32 value row
    return x_tile + out_tile + weights + inter


def _choose_batch_tile(B, S, H, vmem_budget, requested=None):
    if requested is not None:
        return max(_LANE, _round_up(int(requested), _LANE))
    # Target ~2 MiB of x per grid step so the ~0.35 us per-step overhead is
    # amortized and the pipeline runs near HBM roofline at large B.
    target = (2 * 1024 * 1024) // max(1, 4 * S)
    tile = min(32768, max(_LANE, _round_up(target, _LANE)))
    # Shrink until the pipelined footprint fits the generation-aware budget.
    while tile > _LANE and _vmem_estimate_bytes(tile, S, H) > vmem_budget:
        tile = max(_LANE, _round_up(tile // 2, _LANE))
    # Never exceed the 128-padded batch; keep >= 2 grid steps when the batch
    # allows it so v7x's two TensorCores both get work ("parallel" grid axis).
    b128 = _round_up(max(B, 1), _LANE)
    tile = min(tile, b128)
    if b128 >= 2 * _LANE:
        tile = min(tile, _round_up(b128, 2 * _LANE) // 2)
    return tile


def _build_and_run(x, w1, b1, w2, b2, w3, b3, *, batch_tile, B_pad, grid,
                   vmem_limit, single_buffer_weights):
    S = x.shape[1]
    H = w1.shape[1]

    def resident(shape):
        # Weights/biases have a constant block index; single-buffer them when
        # the installed jax supports pipeline_mode (saves VMEM, esp. on v7x).
        if single_buffer_weights:
            return pl.BlockSpec(shape, lambda i: (0, 0),
                                pipeline_mode=pl.Buffered(1))
        return pl.BlockSpec(shape, lambda i: (0, 0))

    return pl.pallas_call(
        critic_kernel,
        out_shape=jax.ShapeDtypeStruct((1, B_pad), jnp.float32),
        grid=grid,
        in_specs=[
            pl.BlockSpec((batch_tile, S), lambda i: (i, 0)),     # x tile (pipelined)
            resident((S, H)),                                    # w1 (bf16)
            resident((1, H)),                                    # b1 (f32)
            resident((H, H)),                                    # w2 (bf16)
            resident((1, H)),                                    # b2 (f32)
            resident((1, H)),                                    # w3 row (bf16)
            pl.BlockSpec(memory_space=pltpu.MemorySpace.SMEM),   # b3 scalar in SMEM
        ],
        out_specs=pl.BlockSpec((1, batch_tile), lambda i: (0, i)),  # lane-dense row
        compiler_params=pltpu.CompilerParams(
            dimension_semantics=("parallel",),   # shard grid steps across v7x's 2 TCs
            vmem_limit_bytes=int(vmem_limit),
        ),
    )(x, w1, b1, w2, b2, w3, b3)


def critic_forward(x, params, *, batch_tile=None):
    """PPO Critic forward pass via a Pallas TPU kernel.

    x: (B, state_dim) float32
    params: w1 (S,H), b1 (1,H), w2 (H,H), b2 (1,H), w3 (1,H), b3 (1,), all f32
    returns: (B, 1) float32
    """
    B, S = x.shape
    H = params["w1"].shape[1]

    # Generation-aware VMEM sizing (64 MiB on v7x, 128 MiB on v5e/v6e).
    vmem_cap = _vmem_capacity_bytes()
    vmem_budget = int(0.70 * vmem_cap)

    batch_tile = _choose_batch_tile(B, S, H, vmem_budget, requested=batch_tile)

    # Pad ragged batches to a multiple of the tile; pad rows are discarded.
    B_pad = _round_up(max(B, 1), batch_tile)
    if B_pad != B:
        x = jnp.pad(x, ((0, B_pad - B), (0, 0)))
    grid = (B_pad // batch_tile,)

    est = _vmem_estimate_bytes(batch_tile, S, H)
    vmem_limit = int(min(int(0.90 * vmem_cap), max(16 * 1024 * 1024, 2 * est)))

    # One-time wrapper-side bf16 cast of the resident weights (reused by every
    # grid step -> strictly cheaper than re-casting inside the kernel and halves
    # the resident weight VMEM / HBM->VMEM DMA).  Biases stay f32 (added on the
    # f32 accumulation path); x stays f32 in HBM and is cast per-tile in-kernel.
    w1 = params["w1"].astype(jnp.bfloat16)
    w2 = params["w2"].astype(jnp.bfloat16)
    w3 = params["w3"].astype(jnp.bfloat16)
    b1 = params["b1"].astype(jnp.float32)
    b2 = params["b2"].astype(jnp.float32)
    b3 = params["b3"].astype(jnp.float32).reshape(1)   # 1-D (1,) scalar for SMEM

    kwargs = dict(batch_tile=batch_tile, B_pad=B_pad, grid=grid,
                  vmem_limit=vmem_limit)
    try:
        out = _build_and_run(x, w1, b1, w2, b2, w3, b3,
                             single_buffer_weights=True, **kwargs)
    except Exception:
        # Fallback for jax versions that reject pipeline_mode=pl.Buffered(1).
        out = _build_and_run(x, w1, b1, w2, b2, w3, b3,
                             single_buffer_weights=False, **kwargs)

    return out.reshape(B_pad, 1)[:B]


# ----------------------------------------------------------------------------
# Deterministic parameter init: mimics torch.nn.init.orthogonal_ on the
# PyTorch-shaped (out_features, in_features) weight.  w1/w2 are stored
# transposed as (in, out); w3 stays in torch layout (1, H) because the kernel
# contracts its last dim.  Biases are zero (as in the module).
# ----------------------------------------------------------------------------
def _orthogonal(key, rows, cols):
    a = jax.random.normal(key, (rows, cols), dtype=jnp.float32)
    if rows < cols:
        a = a.T
    q, r = jnp.linalg.qr(a)
    d = jnp.sign(jnp.diag(r))
    d = jnp.where(d == 0, 1.0, d)
    q = q * d[None, :]
    if rows < cols:
        q = q.T
    return q  # (rows, cols)


def init_critic_params(key, state_dim, hidden_dim):
    k1, k2, k3 = jax.random.split(key, 3)
    w1_t = _orthogonal(k1, hidden_dim, state_dim)    # torch shape (H, S)
    w2_t = _orthogonal(k2, hidden_dim, hidden_dim)   # torch shape (H, H)
    w3_t = _orthogonal(k3, 1, hidden_dim)            # torch shape (1, H)
    return {
        "w1": w1_t.T,                                # (S, H)
        "b1": jnp.zeros((1, hidden_dim), jnp.float32),
        "w2": w2_t.T,                                # (H, H)
        "b2": jnp.zeros((1, hidden_dim), jnp.float32),
        "w3": w3_t,                                  # (1, H)  (torch layout)
        "b3": jnp.zeros((1,), jnp.float32),
    }


def critic_reference(x, p):
    h1 = jnp.tanh(x @ p["w1"] + p["b1"])
    h2 = jnp.tanh(h1 @ p["w2"] + p["b2"])
    return h2 @ p["w3"].T + p["b3"]


if __name__ == "__main__":
    key = jax.random.PRNGKey(0)
    kx, kp = jax.random.split(key)

    # Small shapes; B deliberately not a multiple of 128 to exercise padding and
    # the >=2-grid-step path (128-row tiles -> 2 steps).
    B, STATE_DIM, HIDDEN_DIM = 200, 16, 32
    x = jax.random.normal(kx, (B, STATE_DIM), dtype=jnp.float32)
    params = init_critic_params(kp, STATE_DIM, HIDDEN_DIM)

    # Explicit small tile -> 2 grid steps (pipelining / v7x 2-TC sharding path).
    v = jax.block_until_ready(critic_forward(x, params, batch_tile=128))
    # Default (auto-sized, VMEM-budgeted) tile path.
    v_auto = jax.block_until_ready(critic_forward(x, params))

    v_ref = critic_reference(x, params)
    assert v.shape == (B, 1)
    assert v_auto.shape == (B, 1)
    # bf16 MXU inputs with f32 accumulation -> tolerance loosened vs. f32 ref.
    assert jnp.allclose(v, v_ref, atol=3e-2, rtol=3e-2), float(
        jnp.max(jnp.abs(v - v_ref)))
    assert jnp.allclose(v_auto, v_ref, atol=3e-2, rtol=3e-2), float(
        jnp.max(jnp.abs(v_auto - v_ref)))

    print("KERNEL_OK")
</pallas_src>

<mosaic_0001>
module attributes {stable_mosaic.version = 11 : i64} {
  func.func @critic_kernel(%arg0: i32, %arg1: memref<128x16xf32, #tpu.memory_space<vmem>>, %arg2: memref<16x32xbf16, #tpu.memory_space<vmem>>, %arg3: memref<1x32xf32, #tpu.memory_space<vmem>>, %arg4: memref<32x32xbf16, #tpu.memory_space<vmem>>, %arg5: memref<1x32xf32, #tpu.memory_space<vmem>>, %arg6: memref<1x32xbf16, #tpu.memory_space<vmem>>, %arg7: memref<1xf32, #tpu.memory_space<smem>>, %arg8: memref<1x128xf32, #tpu.memory_space<vmem>>) attributes {dimension_semantics = [#tpu.dimension_semantics<parallel>], iteration_bounds = array<i64: 2>, scalar_prefetch = 0 : i64, scratch_operands = 0 : i64, tpu.core_type = #tpu.core_type<tc>, window_params = [{transform_indices = @transform_0, window_bounds = array<i64: 128, 16>}, {pipeline_mode = #tpu.pipeline_mode<synchronous>, transform_indices = @transform_1, window_bounds = array<i64: 16, 32>}, {pipeline_mode = #tpu.pipeline_mode<synchronous>, transform_indices = @transform_2, window_bounds = array<i64: 1, 32>}, {pipeline_mode = #tpu.pipeline_mode<synchronous>, transform_indices = @transform_3, window_bounds = array<i64: 32, 32>}, {pipeline_mode = #tpu.pipeline_mode<synchronous>, transform_indices = @transform_4, window_bounds = array<i64: 1, 32>}, {pipeline_mode = #tpu.pipeline_mode<synchronous>, transform_indices = @transform_5, window_bounds = array<i64: 1, 32>}, {transform_indices = @transform_6, window_bounds = array<i64: 1>}, {transform_indices = @transform_7, window_bounds = array<i64: 1, 128>}]} {
    %c0 = arith.constant 0 : index
    %c0_0 = arith.constant 0 : index
    %0 = vector.load %arg1[%c0, %c0_0] : memref<128x16xf32, #tpu.memory_space<vmem>>, vector<128x16xf32>
    %1 = arith.truncf %0 : vector<128x16xf32> to vector<128x16xbf16>
    %c0_1 = arith.constant 0 : index
    %c0_2 = arith.constant 0 : index
    %2 = vector.load %arg2[%c0_1, %c0_2] : memref<16x32xbf16, #tpu.memory_space<vmem>>, vector<16x32xbf16>
    %cst = arith.constant dense<0.000000e+00> : vector<128x32xf32>
    %3 = tpu.matmul %1, %2, %cst {dimension_numbers = #tpu.dot_dimension_numbers<[1], [0], [0], [1], [0, 0, 1, 1], [], []>} : vector<128x16xbf16>, vector<16x32xbf16>, vector<128x32xf32> -> vector<128x32xf32>
    %c0_3 = arith.constant 0 : index
    %c0_4 = arith.constant 0 : index
    %4 = vector.load %arg3[%c0_3, %c0_4] : memref<1x32xf32, #tpu.memory_space<vmem>>, vector<1x32xf32>
    %5 = vector.broadcast %4 : vector<1x32xf32> to vector<128x32xf32>
    %6 = arith.addf %3, %5 : vector<128x32xf32>
    %7 = math.tanh %6 : vector<128x32xf32>
    %8 = arith.truncf %7 : vector<128x32xf32> to vector<128x32xbf16>
    %c0_5 = arith.constant 0 : index
    %c0_6 = arith.constant 0 : index
    %9 = vector.load %arg4[%c0_5, %c0_6] : memref<32x32xbf16, #tpu.memory_space<vmem>>, vector<32x32xbf16>
    %cst_7 = arith.constant dense<0.000000e+00> : vector<128x32xf32>
    %10 = tpu.matmul %8, %9, %cst_7 {dimension_numbers = #tpu.dot_dimension_numbers<[1], [0], [0], [1], [0, 0, 1, 1], [], []>} : vector<128x32xbf16>, vector<32x32xbf16>, vector<128x32xf32> -> vector<128x32xf32>
    %c0_8 = arith.constant 0 : index
    %c0_9 = arith.constant 0 : index
    %11 = vector.load %arg5[%c0_8, %c0_9] : memref<1x32xf32, #tpu.memory_space<vmem>>, vector<1x32xf32>
    %12 = vector.broadcast %11 : vector<1x32xf32> to vector<128x32xf32>
    %13 = arith.addf %10, %12 : vector<128x32xf32>
    %14 = math.tanh %13 : vector<128x32xf32>
    %c0_10 = arith.constant 0 : index
    %c0_11 = arith.constant 0 : index
    %15 = vector.load %arg6[%c0_10, %c0_11] : memref<1x32xbf16, #tpu.memory_space<vmem>>, vector<1x32xbf16>
    %16 = arith.truncf %14 : vector<128x32xf32> to vector<128x32xbf16>
    %cst_12 = arith.constant dense<0.000000e+00> : vector<1x128xf32>
    %17 = tpu.matmul %15, %16, %cst_12 {dimension_numbers = #tpu.dot_dimension_numbers<[1], [1], [0], [0], [0, 0, 1, 0], [], []>} : vector<1x32xbf16>, vector<128x32xbf16>, vector<1x128xf32> -> vector<1x128xf32>
    %c0_13 = arith.constant 0 : index
    %18 = memref.load %arg7[%c0_13] : memref<1xf32, #tpu.memory_space<smem>>
    %19 = vector.broadcast %18 : f32 to vector<1x128xf32>
    %20 = arith.addf %17, %19 : vector<1x128xf32>
    %c0_14 = arith.constant 0 : index
    %c0_15 = arith.constant 0 : index
    %21 = vector.load %arg8[%c0_14, %c0_15] : memref<1x128xf32, #tpu.memory_space<vmem>>, vector<1x128xf32>
    tpu.vector_store %arg8[%c0_14, %c0_15], %20 {strides = array<i32>} : memref<1x128xf32, #tpu.memory_space<vmem>>, vector<1x128xf32>,
    return
  }
  func.func @transform_0(%arg0: i32) -> (i32, i32) {
    %c0_i32 = arith.constant 0 : i32
    %c0_i32_0 = arith.constant 0 : i32
    return %arg0, %c0_i32 : i32, i32
  }
  func.func @transform_1(%arg0: i32) -> (i32, i32) {
    %c0_i32 = arith.constant 0 : i32
    %c0_i32_0 = arith.constant 0 : i32
    %c0_i32_1 = arith.constant 0 : i32
    return %c0_i32, %c0_i32_0 : i32, i32
  }
  func.func @transform_2(%arg0: i32) -> (i32, i32) {
    %c0_i32 = arith.constant 0 : i32
    %c0_i32_0 = arith.constant 0 : i32
    %c0_i32_1 = arith.constant 0 : i32
    return %c0_i32, %c0_i32_0 : i32, i32
  }
  func.func @transform_3(%arg0: i32) -> (i32, i32) {
    %c0_i32 = arith.constant 0 : i32
    %c0_i32_0 = arith.constant 0 : i32
    %c0_i32_1 = arith.constant 0 : i32
    return %c0_i32, %c0_i32_0 : i32, i32
  }
  func.func @transform_4(%arg0: i32) -> (i32, i32) {
    %c0_i32 = arith.constant 0 : i32
    %c0_i32_0 = arith.constant 0 : i32
    %c0_i32_1 = arith.constant 0 : i32
    return %c0_i32, %c0_i32_0 : i32, i32
  }
  func.func @transform_5(%arg0: i32) -> (i32, i32) {
    %c0_i32 = arith.constant 0 : i32
    %c0_i32_0 = arith.constant 0 : i32
    %c0_i32_1 = arith.constant 0 : i32
    return %c0_i32, %c0_i32_0 : i32, i32
  }
  func.func @transform_6(%arg0: i32) -> i32 {
    %c0_i32 = arith.constant 0 : i32
    %c0_i32_0 = arith.constant 0 : i32
    return %c0_i32 : i32
  }
  func.func @transform_7(%arg0: i32) -> (i32, i32) {
    %c0_i32 = arith.constant 0 : i32
    %c0_i32_0 = arith.constant 0 : i32
    return %c0_i32, %arg0 : i32, i32
  }
}

module attributes {stable_mosaic.version = 11 : i64} {
  func.func @critic_kernel(%arg0: i32, %arg1: memref<128x16xf32, #tpu.memory_space<vmem>>, %arg2: memref<16x32xbf16, #tpu.memory_space<vmem>>, %arg3: memref<1x32xf32, #tpu.memory_space<vmem>>, %arg4: memref<32x32xbf16, #tpu.memory_space<vmem>>, %arg5: memref<1x32xf32, #tpu.memory_space<vmem>>, %arg6: memref<1x32xbf16, #tpu.memory_space<vmem>>, %arg7: memref<1xf32, #tpu.memory_space<smem>>, %arg8: memref<1x128xf32, #tpu.memory_space<vmem>>) attributes {dimension_semantics = [#tpu.dimension_semantics<parallel>], iteration_bounds = array<i64: 2>, scalar_prefetch = 0 : i64, scratch_operands = 0 : i64, tpu.core_type = #tpu.core_type<tc>, window_params = [{transform_indices = @transform_0, window_bounds = array<i64: 128, 16>}, {pipeline_mode = #tpu.pipeline_mode<synchronous>, transform_indices = @transform_1, window_bounds = array<i64: 16, 32>}, {pipeline_mode = #tpu.pipeline_mode<synchronous>, transform_indices = @transform_2, window_bounds = array<i64: 1, 32>}, {pipeline_mode = #tpu.pipeline_mode<synchronous>, transform_indices = @transform_3, window_bounds = array<i64: 32, 32>}, {pipeline_mode = #tpu.pipeline_mode<synchronous>, transform_indices = @transform_4, window_bounds = array<i64: 1, 32>}, {pipeline_mode = #tpu.pipeline_mode<synchronous>, transform_indices = @transform_5, window_bounds = array<i64: 1, 32>}, {transform_indices = @transform_6, window_bounds = array<i64: 1>}, {transform_indices = @transform_7, window_bounds = array<i64: 1, 128>}]} {
    %c0 = arith.constant 0 : index
    %c0_0 = arith.constant 0 : index
    %0 = vector.load %arg1[%c0, %c0_0] : memref<128x16xf32, #tpu.memory_space<vmem>>, vector<128x16xf32>
    %1 = arith.truncf %0 : vector<128x16xf32> to vector<128x16xbf16>
    %c0_1 = arith.constant 0 : index
    %c0_2 = arith.constant 0 : index
    %2 = vector.load %arg2[%c0_1, %c0_2] : memref<16x32xbf16, #tpu.memory_space<vmem>>, vector<16x32xbf16>
    %cst = arith.constant dense<0.000000e+00> : vector<128x32xf32>
    %3 = tpu.matmul %1, %2, %cst {dimension_numbers = #tpu.dot_dimension_numbers<[1], [0], [0], [1], [0, 0, 1, 1], [], []>} : vector<128x16xbf16>, vector<16x32xbf16>, vector<128x32xf32> -> vector<128x32xf32>
    %c0_3 = arith.constant 0 : index
    %c0_4 = arith.constant 0 : index
    %4 = vector.load %arg3[%c0_3, %c0_4] : memref<1x32xf32, #tpu.memory_space<vmem>>, vector<1x32xf32>
    %5 = vector.broadcast %4 : vector<1x32xf32> to vector<128x32xf32>
    %6 = arith.addf %3, %5 : vector<128x32xf32>
    %7 = math.tanh %6 : vector<128x32xf32>
    %8 = arith.truncf %7 : vector<128x32xf32> to vector<128x32xbf16>
    %c0_5 = arith.constant 0 : index
    %c0_6 = arith.constant 0 : index
    %9 = vector.load %arg4[%c0_5, %c0_6] : memref<32x32xbf16, #tpu.memory_space<vmem>>, vector<32x32xbf16>
    %cst_7 = arith.constant dense<0.000000e+00> : vector<128x32xf32>
    %10 = tpu.matmul %8, %9, %cst_7 {dimension_numbers = #tpu.dot_dimension_numbers<[1], [0], [0], [1], [0, 0, 1, 1], [], []>} : vector<128x32xbf16>, vector<32x32xbf16>, vector<128x32xf32> -> vector<128x32xf32>
    %c0_8 = arith.constant 0 : index
    %c0_9 = arith.constant 0 : index
    %11 = vector.load %arg5[%c0_8, %c0_9] : memref<1x32xf32, #tpu.memory_space<vmem>>, vector<1x32xf32>
    %12 = vector.broadcast %11 : vector<1x32xf32> to vector<128x32xf32>
    %13 = arith.addf %10, %12 : vector<128x32xf32>
    %14 = math.tanh %13 : vector<128x32xf32>
    %c0_10 = arith.constant 0 : index
    %c0_11 = arith.constant 0 : index
    %15 = vector.load %arg6[%c0_10, %c0_11] : memref<1x32xbf16, #tpu.memory_space<vmem>>, vector<1x32xbf16>
    %16 = arith.truncf %14 : vector<128x32xf32> to vector<128x32xbf16>
    %cst_12 = arith.constant dense<0.000000e+00> : vector<1x128xf32>
    %17 = tpu.matmul %15, %16, %cst_12 {dimension_numbers = #tpu.dot_dimension_numbers<[1], [1], [0], [0], [0, 0, 1, 0], [], []>} : vector<1x32xbf16>, vector<128x32xbf16>, vector<1x128xf32> -> vector<1x128xf32>
    %c0_13 = arith.constant 0 : index
    %18 = memref.load %arg7[%c0_13] : memref<1xf32, #tpu.memory_space<smem>>
    %19 = vector.broadcast %18 : f32 to vector<1x128xf32>
    %20 = arith.addf %17, %19 : vector<1x128xf32>
    %c0_14 = arith.constant 0 : index
    %c0_15 = arith.constant 0 : index
    %21 = vector.load %arg8[%c0_14, %c0_15] : memref<1x128xf32, #tpu.memory_space<vmem>>, vector<1x128xf32>
    tpu.vector_store %arg8[%c0_14, %c0_15], %20 {strides = array<i32>} : memref<1x128xf32, #tpu.memory_space<vmem>>, vector<1x128xf32>,
    return
  }
  func.func @transform_0(%arg0: i32) -> (i32, i32) {
    %c0_i32 = arith.constant 0 : i32
    %c0_i32_0 = arith.constant 0 : i32
    return %arg0, %c0_i32 : i32, i32
  }
  func.func @transform_1(%arg0: i32) -> (i32, i32) {
    %c0_i32 = arith.constant 0 : i32
    %c0_i32_0 = arith.constant 0 : i32
    %c0_i32_1 = arith.constant 0 : i32
    return %c0_i32, %c0_i32_0 : i32, i32
  }
  func.func @transform_2(%arg0: i32) -> (i32, i32) {
    %c0_i32 = arith.constant 0 : i32
    %c0_i32_0 = arith.constant 0 : i32
    %c0_i32_1 = arith.constant 0 : i32
    return %c0_i32, %c0_i32_0 : i32, i32
  }
  func.func @transform_3(%arg0: i32) -> (i32, i32) {
    %c0_i32 = arith.constant 0 : i32
    %c0_i32_0 = arith.constant 0 : i32
    %c0_i32_1 = arith.constant 0 : i32
    return %c0_i32, %c0_i32_0 : i32, i32
  }
  func.func @transform_4(%arg0: i32) -> (i32, i32) {
    %c0_i32 = arith.constant 0 : i32
    %c0_i32_0 = arith.constant 0 : i32
    %c0_i32_1 = arith.constant 0 : i32
    return %c0_i32, %c0_i32_0 : i32, i32
  }
  func.func @transform_5(%arg0: i32) -> (i32, i32) {
    %c0_i32 = arith.constant 0 : i32
    %c0_i32_0 = arith.constant 0 : i32
    %c0_i32_1 = arith.constant 0 : i32
    return %c0_i32, %c0_i32_0 : i32, i32
  }
  func.func @transform_6(%arg0: i32) -> i32 {
    %c0_i32 = arith.constant 0 : i32
    %c0_i32_0 = arith.constant 0 : i32
    return %c0_i32 : i32
  }
  func.func @transform_7(%arg0: i32) -> (i32, i32) {
    %c0_i32 = arith.constant 0 : i32
    %c0_i32_0 = arith.constant 0 : i32
    return %c0_i32, %arg0 : i32, i32
  }
}

</mosaic_0001>

<llo_original>
// kernel: tpu_custom_call.1
$region0: #{tpu_custom_call.1}
  #allocation0 [shape = 'u32[]', space=smem, size = 0x4, offset = 0x4, fixed_abs, tag = 'smem constant byte address 0x4 - core index']
  #allocation1 [shape = 'u32[144,128]{1,0:T(1,128)}', space=vmem, size = 0x12000, scoped, tag = 'internal scratch']
  #allocation2 [shape = 'f32[1]{0:T(128)S(6)}', space=smem, size = 0x200, scoped, tag = 'scoped memory for tpu_custom_call.1']
  %s0 = inlined_call_operand.vmem [shape: f32[256,16], index: 0, kind: input, shape index: {}]
  %s1 = inlined_call_operand.vmem [shape: bf16[16,32], index: 1, kind: input, shape index: {}]
  %s2 = inlined_call_operand.vmem [shape: f32[1,32], index: 2, kind: input, shape index: {}]
  %s3 = inlined_call_operand.vmem [shape: bf16[32,32], index: 3, kind: input, shape index: {}]
  %s4 = inlined_call_operand.vmem [shape: f32[1,32], index: 4, kind: input, shape index: {}]
  %s5 = inlined_call_operand.vmem [shape: bf16[1,32], index: 5, kind: input, shape index: {}]
  %s6 = inlined_call_operand.<no memory space> [shape: f32[1], index: 6, kind: input, shape index: {}]
  %s7 = inlined_call_operand.hbm [shape: f32[1,256], index: 7, kind: output, shape index: {}]
  %s8 = sld [smem:[#allocation0]]
  $region61: #{tpu_custom_call.1} parent=0
    _
  %s10 = ssub.s32 1, %s8
  %s11 = scalar_select 0, %s10, %s8
  %12 = sst [smem:[#allocation2]] %s6
  $region1: #{tpu_custom_call.1} parent=0
    #allocation3 [shape = 'u8[1024]{0}', space=vmem, size = 0x400, scoped, tag = 'output window, operand 0']
    #allocation4 [shape = 's32[2]{0}', space=sflag, size = 0x8, scoped, tag = 'scoped memory for tpu_custom_call.1']
    %13 = vsyncpa [#allocation4], 0
    %s14 = scalar_lea.sflag [#allocation4], 1
    %15 = vsyncpa %s14, 0
    loop: start=0, step=1, limit=4
    $region2: #{tpu_custom_call.1} parent=1 // loop_pre_header
      _
    $region3: #{tpu_custom_call.1} parent=1 // loop_header
      %s17 = sphi 0, %s21
      %p18 = scmp.ge.s32.totalorder %s17, 4
      %s27 = sphi 0, %s29
      %s30 = sphi 0, %s27
      %s31 = sphi 0, %s30
      %s47 = sphi 0, %s31
      %s51 = sphi 0, %s51
      %s53 = sphi 0, %s51
      %s54 = sphi 0, %s53
      %s68 = sphi 0, %s54
      %s72 = sphi 0, %s72
      %s74 = sphi 0, %s72
      %s75 = sphi 0, %s74
      %s89 = sphi 0, %s75
      %s93 = sphi 0, %s93
      %s95 = sphi 0, %s93
      %s96 = sphi 0, %s95
      %s110 = sphi 0, %s96
      %s114 = sphi 0, %s114
      %s116 = sphi 0, %s114
      %s117 = sphi 0, %s116
      %s131 = sphi 0, %s117
      %s135 = sphi 0, %s135
      %s137 = sphi 0, %s135
      %s138 = sphi 0, %s137
      %s152 = sphi 0, %s138
      %s156 = sphi 0, %s156
      %s158 = sphi 0, %s156
      %s159 = sphi 0, %s158
      %s173 = sphi 0, %s159
      %s179 = sphi 0, %s181
      %s182 = sphi 0, %s179
      %s183 = sphi 0, %s182
      %s199 = sphi 0, %s183
    $region4: #{tpu_custom_call.1} parent=1 // loop_header_branch
      %20 = sbr.rel (%p18) target = $region8
    $region5: #{tpu_custom_call.1} parent=1 // loop_body
      %s22 = ssub.s32 %s17, 1
      %s23 = ssub.s32 %s17, 2
      %s24 = sadd.s32 %s17, 1
      %s25 = ssub.s32 %s17, %s24
      %p26 = scmp.eq.s32.totalorder %s25, 0
      %s28 = sadd.s32 %s27, 1
      %s29 = scalar_select %p26, %s27, %s28
      %p32 = pneg %p26
      %p33 = scmp.eq.s32.totalorder %s17, 1
      %p34 = por %p32, %p33
      %p35 = scmp.ne.s32.totalorder %s27, %s30
      %p36 = scmp.eq.s32.totalorder %s17, 0
      %p37 = por %p35, %p36
      %p38 = scmp.ne.s32.totalorder %s27, %s30
      %p39 = scmp.eq.s32.totalorder %s22, 1
      %p40 = por %p38, %p39
      %p41 = scmp.ne.s32.totalorder %s30, %s31
      %p42 = scmp.eq.s32.totalorder %s22, 0
      %p43 = por %p41, %p42
      %p44 = scmp.ne.s32.totalorder %s30, %s31
      %p45 = scmp.eq.s32.totalorder %s23, 1
      %p46 = por %p44, %p45
      %p48 = scmp.ne.s32.totalorder %s31, %s47
      %p49 = scmp.eq.s32.totalorder %s23, 0
      %p50 = por %p48, %p49
      %s52 = sadd.s32 %s51, 1
      %p55 = scmp.eq.s32.totalorder %s17, 1
      %p56 = scmp.ne.s32.totalorder %s51, %s53
      %p57 = scmp.eq.s32.totalorder %s17, 0
      %p58 = por %p56, %p57
      %p59 = scmp.ne.s32.totalorder %s51, %s53
      %p60 = scmp.eq.s32.totalorder %s22, 1
      %p61 = por %p59, %p60
      %p62 = scmp.ne.s32.totalorder %s53, %s54
      %p63 = scmp.eq.s32.totalorder %s22, 0
      %p64 = por %p62, %p63
      %p65 = scmp.ne.s32.totalorder %s53, %s54
      %p66 = scmp.eq.s32.totalorder %s23, 1
      %p67 = por %p65, %p66
      %p69 = scmp.ne.s32.totalorder %s54, %s68
      %p70 = scmp.eq.s32.totalorder %s23, 0
      %p71 = por %p69, %p70
      %s73 = sadd.s32 %s72, 1
      %p76 = scmp.eq.s32.totalorder %s17, 1
      %p77 = scmp.ne.s32.totalorder %s72, %s74
      %p78 = scmp.eq.s32.totalorder %s17, 0
      %p79 = por %p77, %p78
      %p80 = scmp.ne.s32.totalorder %s72, %s74
      %p81 = scmp.eq.s32.totalorder %s22, 1
      %p82 = por %p80, %p81
      %p83 = scmp.ne.s32.totalorder %s74, %s75
      %p84 = scmp.eq.s32.totalorder %s22, 0
      %p85 = por %p83, %p84
      %p86 = scmp.ne.s32.totalorder %s74, %s75
      %p87 = scmp.eq.s32.totalorder %s23, 1
      %p88 = por %p86, %p87
      %p90 = scmp.ne.s32.totalorder %s75, %s89
      %p91 = scmp.eq.s32.totalorder %s23, 0
      %p92 = por %p90, %p91
      %s94 = sadd.s32 %s93, 1
      %p97 = scmp.eq.s32.totalorder %s17, 1
      %p98 = scmp.ne.s32.totalorder %s93, %s95
      %p99 = scmp.eq.s32.totalorder %s17, 0
      %p100 = por %p98, %p99
      %p101 = scmp.ne.s32.totalorder %s93, %s95
      %p102 = scmp.eq.s32.totalorder %s22, 1
      %p103 = por %p101, %p102
      %p104 = scmp.ne.s32.totalorder %s95, %s96
      %p105 = scmp.eq.s32.totalorder %s22, 0
      %p106 = por %p104, %p105
      %p107 = scmp.ne.s32.totalorder %s95, %s96
      %p108 = scmp.eq.s32.totalorder %s23, 1
      %p109 = por %p107, %p108
      %p111 = scmp.ne.s32.totalorder %s96, %s110
      %p112 = scmp.eq.s32.totalorder %s23, 0
      %p113 = por %p111, %p112
      %s115 = sadd.s32 %s114, 1
      %p118 = scmp.eq.s32.totalorder %s17, 1
      %p119 = scmp.ne.s32.totalorder %s114, %s116
      %p120 = scmp.eq.s32.totalorder %s17, 0
      %p121 = por %p119, %p120
      %p122 = scmp.ne.s32.totalorder %s114, %s116
      %p123 = scmp.eq.s32.totalorder %s22, 1
      %p124 = por %p122, %p123
      %p125 = scmp.ne.s32.totalorder %s116, %s117
      %p126 = scmp.eq.s32.totalorder %s22, 0
      %p127 = por %p125, %p126
      %p128 = scmp.ne.s32.totalorder %s116, %s117
      %p129 = scmp.eq.s32.totalorder %s23, 1
      %p130 = por %p128, %p129
      %p132 = scmp.ne.s32.totalorder %s117, %s131
      %p133 = scmp.eq.s32.totalorder %s23, 0
      %p134 = por %p132, %p133
      %s136 = sadd.s32 %s135, 1
      %p139 = scmp.eq.s32.totalorder %s17, 1
      %p140 = scmp.ne.s32.totalorder %s135, %s137
      %p141 = scmp.eq.s32.totalorder %s17, 0
      %p142 = por %p140, %p141
      %p143 = scmp.ne.s32.totalorder %s135, %s137
      %p144 = scmp.eq.s32.totalorder %s22, 1
      %p145 = por %p143, %p144
      %p146 = scmp.ne.s32.totalorder %s137, %s138
      %p147 = scmp.eq.s32.totalorder %s22, 0
      %p148 = por %p146, %p147
      %p149 = scmp.ne.s32.totalorder %s137, %s138
      %p150 = scmp.eq.s32.totalorder %s23, 1
      %p151 = por %p149, %p150
      %p153 = scmp.ne.s32.totalorder %s138, %s152
      %p154 = scmp.eq.s32.totalorder %s23, 0
      %p155 = por %p153, %p154
      %s157 = sadd.s32 %s156, 1
      %p160 = scmp.eq.s32.totalorder %s17, 1
      %p161 = scmp.ne.s32.totalorder %s156, %s158
      %p162 = scmp.eq.s32.totalorder %s17, 0
      %p163 = por %p161, %p162
      %p164 = scmp.ne.s32.totalorder %s156, %s158
      %p165 = scmp.eq.s32.totalorder %s22, 1
      %p166 = por %p164, %p165
      %p167 = scmp.ne.s32.totalorder %s158, %s159
      %p168 = scmp.eq.s32.totalorder %s22, 0
      %p169 = por %p167, %p168
      %p170 = scmp.ne.s32.totalorder %s158, %s159
      %p171 = scmp.eq.s32.totalorder %s23, 1
      %p172 = por %p170, %p171
      %p174 = scmp.ne.s32.totalorder %s159, %s173
      %p175 = scmp.eq.s32.totalorder %s23, 0
      %p176 = por %p174, %p175
      %s177 = ssub.s32 %s17, %s24
      %p178 = scmp.eq.s32.totalorder %s177, 0
      %s180 = sadd.s32 %s179, 1
      %s181 = scalar_select %p178, %s179, %s180
      %p184 = pneg %p178
      %p185 = scmp.eq.s32.totalorder %s17, 1
      %p186 = por %p184, %p185
      %p187 = scmp.ne.s32.totalorder %s179, %s182
      %p188 = scmp.eq.s32.totalorder %s17, 0
      %p189 = por %p187, %p188
      %p190 = scmp.ne.s32.totalorder %s179, %s182
      %p191 = scmp.eq.s32.totalorder %s22, 1
      %p192 = por %p190, %p191
      %p193 = scmp.ne.s32.totalorder %s182, %s183
      %p194 = scmp.eq.s32.totalorder %s22, 0
      %p195 = por %p193, %p194
      %p196 = scmp.ne.s32.totalorder %s182, %s183
      %p197 = scmp.eq.s32.totalorder %s23, 1
      %p198 = por %p196, %p197
      %p200 = scmp.ne.s32.totalorder %s183, %s199
      %p201 = scmp.eq.s32.totalorder %s23, 0
      %p202 = por %p200, %p201
      %p203 = scmp.le.s32.totalorder 1, %s17
      %p204 = scmp.lt.s32.totalorder %s17, 3
      %p205 = pnand %p203, %p204
      %p206 = pneg %p205
      // Predicated region
      $region9: #{tpu_custom_call.1} parent=5 // pred_check
        _
      $region10: #{tpu_custom_call.1} parent=5 // pred_check_branch
        %208 = sbr.rel (%p205) target = $region12
      $region11: #{tpu_custom_call.1} parent=5 // pred_region
        %s209 = ssub.s32 %s17, 1
        // Predicated region
        $region13: #{tpu_custom_call.1} parent=11 // pred_check
          %p210 = pneg %p64
        $region14: #{tpu_custom_call.1} parent=11 // pred_check_branch
          %212 = sbr.rel (%p210) target = $region16
        $region15: #{tpu_custom_call.1} parent=11 // pred_region
          _
        $region16: #{tpu_custom_call.1} parent=11 // pred_fallthru
          _
        // Predicated region
        $region17: #{tpu_custom_call.1} parent=11 // pred_check
          %p213 = pneg %p85
        $region18: #{tpu_custom_call.1} parent=11 // pred_check_branch
          %215 = sbr.rel (%p213) target = $region20
        $region19: #{tpu_custom_call.1} parent=11 // pred_region
          _
        $region20: #{tpu_custom_call.1} parent=11 // pred_fallthru
          _
        // Predicated region
        $region21: #{tpu_custom_call.1} parent=11 // pred_check
          %p216 = pneg %p106
        $region22: #{tpu_custom_call.1} parent=11 // pred_check_branch
          %218 = sbr.rel (%p216) target = $region24
        $region23: #{tpu_custom_call.1} parent=11 // pred_region
          _
        $region24: #{tpu_custom_call.1} parent=11 // pred_fallthru
          _
        // Predicated region
        $region25: #{tpu_custom_call.1} parent=11 // pred_check
          %p219 = pneg %p127
        $region26: #{tpu_custom_call.1} parent=11 // pred_check_branch
          %221 = sbr.rel (%p219) target = $region28
        $region27: #{tpu_custom_call.1} parent=11 // pred_region
          _
        $region28: #{tpu_custom_call.1} parent=11 // pred_fallthru
          _
        // Predicated region
        $region29: #{tpu_custom_call.1} parent=11 // pred_check
          %p222 = pneg %p148
        $region30: #{tpu_custom_call.1} parent=11 // pred_check_branch
          %224 = sbr.rel (%p222) target = $region32
        $region31: #{tpu_custom_call.1} parent=11 // pred_region
          _
        $region32: #{tpu_custom_call.1} parent=11 // pred_fallthru
          _
        // Predicated region
        $region33: #{tpu_custom_call.1} parent=11 // pred_check
          %p225 = pneg %p169
        $region34: #{tpu_custom_call.1} parent=11 // pred_check_branch
          %227 = sbr.rel (%p225) target = $region36
        $region35: #{tpu_custom_call.1} parent=11 // pred_region
          _
        $region36: #{tpu_custom_call.1} parent=11 // pred_fallthru
          _
      $region12: #{tpu_custom_call.1} parent=5 // pred_fallthru
        _
      %p228 = scmp.lt.s32.totalorder %s17, 2
      // Predicated region
      $region37: #{tpu_custom_call.1} parent=5 // pred_check
        %p229 = pneg %p228
      $region38: #{tpu_custom_call.1} parent=5 // pred_check_branch
        %231 = sbr.rel (%p229) target = $region40
      $region39: #{tpu_custom_call.1} parent=5 // pred_region
        // Predicated region
        $region41: #{tpu_custom_call.1} parent=39 // pred_check
          %p232 = pneg %p37
        $region42: #{tpu_custom_call.1} parent=39 // pred_check_branch
          %234 = sbr.rel (%p232) target = $region44
        $region43: #{tpu_custom_call.1} parent=39 // pred_region
          %s235 = smul.u32 16, %s17
          %p236 = scmp.lt.s32.totalorder %s235, 31
          %s237 = scalar_select %p236, %s235, 31
          %s238 = smul.addr %s237, 8
          %s239 = scalar_lea.vmem %s0, %s238
          %s240 = smul.u32 16, %s17
        $region44: #{tpu_custom_call.1} parent=39 // pred_fallthru
          _
      $region40: #{tpu_custom_call.1} parent=5 // pred_fallthru
        _
      %p241 = scmp.le.s32.totalorder 1, %s17
      %p242 = scmp.lt.s32.totalorder %s17, 3
      %p243 = pnand %p241, %p242
      %p244 = pneg %p243
      // Predicated region
      $region45: #{tpu_custom_call.1} parent=5 // pred_check
        _
      $region46: #{tpu_custom_call.1} parent=5 // pred_check_branch
        %246 = sbr.rel (%p243) target = $region48
      $region47: #{tpu_custom_call.1} parent=5 // pred_region
        %s247 = ssub.s32 %s17, 1
        %s248 = smul.u32 16, %s22
        %p249 = scmp.lt.s32.totalorder %s248, 31
        %s250 = scalar_select %p249, %s248, 31
        %s251 = smul.addr %s250, 8
        %s252 = scalar_lea.vmem %s0, %s251
        %p253 = pneg %p43
        %p254 = pneg %p40
        %p255 = pneg %p64
        %p256 = pneg %p61
        %p257 = pneg %p85
        %p258 = pneg %p82
        %p259 = pneg %p106
        %p260 = pneg %p103
        %p261 = pneg %p127
        %p262 = pneg %p124
        %p263 = pneg %p148
        %p264 = pneg %p145
        %p265 = pneg %p169
        %p266 = pneg %p166
        %p267 = pneg %p195
        %p268 = pneg %p192
        %s269 = sand.u32 %s182, 1
        %s270 = scalar_lea.sflag [#allocation4], %s269
        %s271 = sand.u32 %s182, 1
        %s272 = scalar_lea.vmem [#allocation3], %s271
        %s273 = smul.u32 16, %s22
        %p274 = scmp.lt.s32.totalorder %s273, 31
        %s275 = scalar_select %p274, %s273, 31
        %s276 = smul.addr %s275, 8
        %s277 = scalar_lea.vmem %s0, %s276
        %s278 = smul.u32 16, %s22
        %v280 = vld [vmem:[%s277] sm:$0xff]
        %v281 = vld [vmem:[%s277 + $0x8] sm:$0xff]
        %v282 = vld [vmem:[%s277 + $0x10] sm:$0xff]
        %v283 = vld [vmem:[%s277 + $0x18] sm:$0xff]
        %v284 = vld [vmem:[%s277 + $0x20] sm:$0xff]
        %v285 = vld [vmem:[%s277 + $0x28] sm:$0xff]
        %v286 = vld [vmem:[%s277 + $0x30] sm:$0xff]
        %v287 = vld [vmem:[%s277 + $0x38] sm:$0xff]
        %v288 = vld [vmem:[%s277 + $0x40] sm:$0xff]
        %v289 = vld [vmem:[%s277 + $0x48] sm:$0xff]
        %v290 = vld [vmem:[%s277 + $0x50] sm:$0xff]
        %v291 = vld [vmem:[%s277 + $0x58] sm:$0xff]
        %v292 = vld [vmem:[%s277 + $0x60] sm:$0xff]
        %v293 = vld [vmem:[%s277 + $0x68] sm:$0xff]
        %v294 = vld [vmem:[%s277 + $0x70] sm:$0xff]
        %v295 = vld [vmem:[%s277 + $0x78] sm:$0xff]
        %v296 = vpack.c.bf16 %v281, %v280
        %v297 = vpack.c.bf16 %v283, %v282
        %v298 = vpack.c.bf16 %v285, %v284
        %v299 = vpack.c.bf16 %v287, %v286
        %v300 = vpack.c.bf16 %v289, %v288
        %v301 = vpack.c.bf16 %v291, %v290
        %v302 = vpack.c.bf16 %v293, %v292
        %v303 = vpack.c.bf16 %v295, %v294
        %v304 = vld [vmem:[%s1] sm:$0xf]
        %v305 = vld [vmem:[%s1 + $0x4] sm:$0xf]
        %v306 = vld [vmem:[%s2] sm:$0x1]
        %v308 = vlaneseq
        %v309 = vshrl.u32 %v308, 7
        %v310 = vsub.s32 0, %v309
        %v311 = vrot.slane %v306, %v310
        %v315 = vunpack.c.l.b16 %v304
        %v316 = vunpack.c.l.b16 %v305
        %v317 = vpack.c.b16 %v316, %v315
        %vm319 = vcmask 130048
        %v321 = vsel %vm319, %v296, 0
        %v324 = vsel %vm319, %v297, 0
        %v327 = vsel %vm319, %v298, 0
        %v330 = vsel %vm319, %v299, 0
        %v333 = vsel %vm319, %v300, 0
        %v336 = vsel %vm319, %v301, 0
        %v339 = vsel %vm319, %v302, 0
        %v342 = vsel %vm319, %v303, 0
        %344 = vmatprep.subr.bf16.mxu0 0
        %345 = vmatpush1.bf16.msra.mxu0 0
        %346 = vmatprep.subr.bf16.mxu0 0
        %347 = vmatpush1.bf16.msra.mxu0 0
        %348 = vmatprep.subr.bf16.mxu0 0
        %349 = vmatpush1.bf16.msra.mxu0 0
        %350 = vmatprep.subr.bf16.mxu0 0
        %351 = vmatpush1.bf16.msra.mxu0 0
        %352 = vmatprep.subr.bf16.mxu0 0
        %353 = vmatpush1.bf16.msra.mxu0 0
        %354 = vmatprep.subr.bf16.mxu0 0
        %355 = vmatpush1.bf16.msra.mxu0 0
        %356 = vmatprep.subr.bf16.mxu0 0
        %357 = vmatpush1.bf16.msra.mxu0 0
        %358 = vmatprep.subr.bf16.mxu0 0
        %359 = vmatpush1.bf16.msra.mxu0 %v317
        %360 = vmatprep.subr.bf16.mxu0 0
        %361 = vmatpush2.bf16.msra.mxu0 0
        %362 = vmatprep.subr.bf16.mxu0 0
        %363 = vmatpush2.bf16.msra.mxu0 0
        %364 = vmatprep.subr.bf16.mxu0 0
        %365 = vmatpush2.bf16.msra.mxu0 0
        %366 = vmatprep.subr.bf16.mxu0 0
        %367 = vmatpush2.bf16.msra.mxu0 0
        %368 = vmatprep.subr.bf16.mxu0 0
        %369 = vmatpush2.bf16.msra.mxu0 0
        %370 = vmatprep.subr.bf16.mxu0 0
        %371 = vmatpush2.bf16.msra.mxu0 0
        %372 = vmatprep.subr.bf16.mxu0 0
        %373 = vmatpush2.bf16.msra.mxu0 0
        %374 = vmatprep.subr.bf16.mxu0 0
        %375 = vmatpush2.bf16.msra.mxu0 0
        %376 = vmatprep.mubr.bf16.mxu0 0
        %377 = vmatmul.mubr.bf16.gmra.mxu0 %v321
        %v378 = vpop.f32.mrf.mxu0
        %v379 = vadd.f32 %v311, %v378
        %v380 = vpop.f32.mrf.mxu0
        %v381 = vpop.f32.mrf.mxu0
        %v382 = vadd.f32 %v311, %v381
        %v383 = vpop.f32.mrf.mxu0
        %384 = vmatprep.mubr.bf16.mxu0 0
        %385 = vmatmul.mubr.bf16.gmra.mxu0 %v324
        %v386 = vpop.f32.mrf.mxu0
        %v387 = vadd.f32 %v311, %v386
        %v388 = vpop.f32.mrf.mxu0
        %v389 = vpop.f32.mrf.mxu0
        %v390 = vadd.f32 %v311, %v389
        %v391 = vpop.f32.mrf.mxu0
        %392 = vmatprep.mubr.bf16.mxu0 0
        %393 = vmatmul.mubr.bf16.gmra.mxu0 %v327
        %v394 = vpop.f32.mrf.mxu0
        %v395 = vadd.f32 %v311, %v394
        %v396 = vpop.f32.mrf.mxu0
        %v397 = vpop.f32.mrf.mxu0
        %v398 = vadd.f32 %v311, %v397
        %v399 = vpop.f32.mrf.mxu0
        %400 = vmatprep.mubr.bf16.mxu0 0
        %401 = vmatmul.mubr.bf16.gmra.mxu0 %v330
        %v402 = vpop.f32.mrf.mxu0
        %v403 = vadd.f32 %v311, %v402
        %v404 = vpop.f32.mrf.mxu0
        %v405 = vpop.f32.mrf.mxu0
        %v406 = vadd.f32 %v311, %v405
        %v407 = vpop.f32.mrf.mxu0
        %408 = vmatprep.mubr.bf16.mxu0 0
        %409 = vmatmul.mubr.bf16.gmra.mxu0 %v333
        %v410 = vpop.f32.mrf.mxu0
        %v411 = vadd.f32 %v311, %v410
        %v412 = vpop.f32.mrf.mxu0
        %v413 = vpop.f32.mrf.mxu0
        %v414 = vadd.f32 %v311, %v413
        %v415 = vpop.f32.mrf.mxu0
        %416 = vmatprep.mubr.bf16.mxu0 0
        %417 = vmatmul.mubr.bf16.gmra.mxu0 %v336
        %v418 = vpop.f32.mrf.mxu0
        %v419 = vadd.f32 %v311, %v418
        %v420 = vpop.f32.mrf.mxu0
        %v421 = vpop.f32.mrf.mxu0
        %v422 = vadd.f32 %v311, %v421
        %v423 = vpop.f32.mrf.mxu0
        %424 = vmatprep.mubr.bf16.mxu0 0
        %425 = vmatmul.mubr.bf16.gmra.mxu0 %v339
        %v426 = vpop.f32.mrf.mxu0
        %v427 = vadd.f32 %v311, %v426
        %v428 = vpop.f32.mrf.mxu0
        %v429 = vpop.f32.mrf.mxu0
        %v430 = vadd.f32 %v311, %v429
        %v431 = vpop.f32.mrf.mxu0
        %432 = vmatprep.mubr.bf16.mxu0 0
        %433 = vmatmul.mubr.bf16.gmra.mxu0 %v342
        %v434 = vpop.f32.mrf.mxu0
        %v435 = vadd.f32 %v311, %v434
        %v436 = vpop.f32.mrf.mxu0
        %v437 = vpop.f32.mrf.mxu0
        %v438 = vadd.f32 %v311, %v437
        %v439 = vpop.f32.mrf.mxu0
        %440 = vdwg.mxu0
        %v441 = vtanh.pop %v379
        %v442 = vtanh.pop %v382
        %v443 = vtanh.pop %v387
        %v444 = vtanh.pop %v390
        %v445 = vtanh.pop %v395
        %v446 = vtanh.pop %v398
        %v447 = vtanh.pop %v403
        %v448 = vtanh.pop %v406
        %v449 = vtanh.pop %v411
        %v450 = vtanh.pop %v414
        %v451 = vtanh.pop %v419
        %v452 = vtanh.pop %v422
        %v453 = vtanh.pop %v427
        %v454 = vtanh.pop %v430
        %v455 = vtanh.pop %v435
        %v456 = vtanh.pop %v438
        %v457 = vpack.c.bf16 %v442, %v441
        %v458 = vpack.c.bf16 %v444, %v443
        %v459 = vpack.c.bf16 %v446, %v445
        %v460 = vpack.c.bf16 %v448, %v447
        %v461 = vpack.c.bf16 %v450, %v449
        %v462 = vpack.c.bf16 %v452, %v451
        %v463 = vpack.c.bf16 %v454, %v453
        %v464 = vpack.c.bf16 %v456, %v455
        %v465 = vld [vmem:[%s3] sm:$0xf]
        %v466 = vld [vmem:[%s3 + $0x4] sm:$0xf]
        %v467 = vld [vmem:[%s3 + $0x8] sm:$0xf]
        %v468 = vld [vmem:[%s3 + $0xc] sm:$0xf]
        %v469 = vld [vmem:[%s4] sm:$0x1]
        %v471 = vlaneseq
        %v472 = vshrl.u32 %v471, 7
        %v473 = vsub.s32 0, %v472
        %v474 = vrot.slane %v469, %v473
        %v480 = vunpack.c.l.b16 %v465
        %v481 = vunpack.c.l.b16 %v466
        %v482 = vunpack.c.l.b16 %v467
        %v483 = vunpack.c.l.b16 %v468
        %v484 = vpack.c.b16 %v481, %v480
        %v485 = vpack.c.b16 %v483, %v482
        %vm488 = vcmask 261120
        %v490 = vsel %vm488, %v457, 0
        %v493 = vsel %vm488, %v458, 0
        %v496 = vsel %vm488, %v459, 0
        %v499 = vsel %vm488, %v460, 0
        %v502 = vsel %vm488, %v461, 0
        %v505 = vsel %vm488, %v462, 0
        %v508 = vsel %vm488, %v463, 0
        %v511 = vsel %vm488, %v464, 0
        %513 = vmatprep.subr.bf16.mxu0 0
        %514 = vmatpush1.bf16.msra.mxu0 0
        %515 = vmatprep.subr.bf16.mxu0 0
        %516 = vmatpush1.bf16.msra.mxu0 0
        %517 = vmatprep.subr.bf16.mxu0 0
        %518 = vmatpush1.bf16.msra.mxu0 0
        %519 = vmatprep.subr.bf16.mxu0 0
        %520 = vmatpush1.bf16.msra.mxu0 0
        %521 = vmatprep.subr.bf16.mxu0 0
        %522 = vmatpush1.bf16.msra.mxu0 0
        %523 = vmatprep.subr.bf16.mxu0 0
        %524 = vmatpush1.bf16.msra.mxu0 0
        %525 = vmatprep.subr.bf16.mxu0 0
        %526 = vmatpush1.bf16.msra.mxu0 %v485
        %527 = vmatprep.subr.bf16.mxu0 0
        %528 = vmatpush1.bf16.msra.mxu0 %v484
        %529 = vmatprep.subr.bf16.mxu0 0
        %530 = vmatpush2.bf16.msra.mxu0 0
        %531 = vmatprep.subr.bf16.mxu0 0
        %532 = vmatpush2.bf16.msra.mxu0 0
        %533 = vmatprep.subr.bf16.mxu0 0
        %534 = vmatpush2.bf16.msra.mxu0 0
        %535 = vmatprep.subr.bf16.mxu0 0
        %536 = vmatpush2.bf16.msra.mxu0 0
        %537 = vmatprep.subr.bf16.mxu0 0
        %538 = vmatpush2.bf16.msra.mxu0 0
        %539 = vmatprep.subr.bf16.mxu0 0
        %540 = vmatpush2.bf16.msra.mxu0 0
        %541 = vmatprep.subr.bf16.mxu0 0
        %542 = vmatpush2.bf16.msra.mxu0 0
        %543 = vmatprep.subr.bf16.mxu0 0
        %544 = vmatpush2.bf16.msra.mxu0 0
        %545 = vmatprep.mubr.bf16.mxu0 0
        %546 = vmatmul.mubr.bf16.gmra.mxu0 %v490
        %v547 = vpop.f32.mrf.mxu0
        %v548 = vadd.f32 %v474, %v547
        %v549 = vpop.f32.mrf.mxu0
        %v550 = vpop.f32.mrf.mxu0
        %v551 = vadd.f32 %v474, %v550
        %v552 = vpop.f32.mrf.mxu0
        %553 = vmatprep.mubr.bf16.mxu0 0
        %554 = vmatmul.mubr.bf16.gmra.mxu0 %v493
        %v555 = vpop.f32.mrf.mxu0
        %v556 = vadd.f32 %v474, %v555
        %v557 = vpop.f32.mrf.mxu0
        %v558 = vpop.f32.mrf.mxu0
        %v559 = vadd.f32 %v474, %v558
        %v560 = vpop.f32.mrf.mxu0
        %561 = vmatprep.mubr.bf16.mxu0 0
        %562 = vmatmul.mubr.bf16.gmra.mxu0 %v496
        %v563 = vpop.f32.mrf.mxu0
        %v564 = vadd.f32 %v474, %v563
        %v565 = vpop.f32.mrf.mxu0
        %v566 = vpop.f32.mrf.mxu0
        %v567 = vadd.f32 %v474, %v566
        %v568 = vpop.f32.mrf.mxu0
        %569 = vmatprep.mubr.bf16.mxu0 0
        %570 = vmatmul.mubr.bf16.gmra.mxu0 %v499
        %v571 = vpop.f32.mrf.mxu0
        %v572 = vadd.f32 %v474, %v571
        %v573 = vpop.f32.mrf.mxu0
        %v574 = vpop.f32.mrf.mxu0
        %v575 = vadd.f32 %v474, %v574
        %v576 = vpop.f32.mrf.mxu0
        %577 = vmatprep.mubr.bf16.mxu0 0
        %578 = vmatmul.mubr.bf16.gmra.mxu0 %v502
        %v579 = vpop.f32.mrf.mxu0
        %v580 = vadd.f32 %v474, %v579
        %v581 = vpop.f32.mrf.mxu0
        %v582 = vpop.f32.mrf.mxu0
        %v583 = vadd.f32 %v474, %v582
        %v584 = vpop.f32.mrf.mxu0
        %585 = vmatprep.mubr.bf16.mxu0 0
        %586 = vmatmul.mubr.bf16.gmra.mxu0 %v505
        %v587 = vpop.f32.mrf.mxu0
        %v588 = vadd.f32 %v474, %v587
        %v589 = vpop.f32.mrf.mxu0
        %v590 = vpop.f32.mrf.mxu0
        %v591 = vadd.f32 %v474, %v590
        %v592 = vpop.f32.mrf.mxu0
        %593 = vmatprep.mubr.bf16.mxu0 0
        %594 = vmatmul.mubr.bf16.gmra.mxu0 %v508
        %v595 = vpop.f32.mrf.mxu0
        %v596 = vadd.f32 %v474, %v595
        %v597 = vpop.f32.mrf.mxu0
        %v598 = vpop.f32.mrf.mxu0
        %v599 = vadd.f32 %v474, %v598
        %v600 = vpop.f32.mrf.mxu0
        %601 = vmatprep.mubr.bf16.mxu0 0
        %602 = vmatmul.mubr.bf16.gmra.mxu0 %v511
        %v603 = vpop.f32.mrf.mxu0
        %v604 = vadd.f32 %v474, %v603
        %v605 = vpop.f32.mrf.mxu0
        %v606 = vpop.f32.mrf.mxu0
        %v607 = vadd.f32 %v474, %v606
        %v608 = vpop.f32.mrf.mxu0
        %609 = vdwg.mxu0
        %v610 = vtanh.pop %v548
        %v611 = vtanh.pop %v551
        %v612 = vtanh.pop %v556
        %v613 = vtanh.pop %v559
        %v614 = vtanh.pop %v564
        %v615 = vtanh.pop %v567
        %v616 = vtanh.pop %v572
        %v617 = vtanh.pop %v575
        %v618 = vtanh.pop %v580
        %v619 = vtanh.pop %v583
        %v620 = vtanh.pop %v588
        %v621 = vtanh.pop %v591
        %v622 = vtanh.pop %v596
        %v623 = vtanh.pop %v599
        %v624 = vtanh.pop %v604
        %v625 = vtanh.pop %v607
        %v626 = vld [vmem:[%s5] sm:$0x1]
        %v627 = vpack.c.bf16 %v611, %v610
        %v628 = vpack.c.bf16 %v613, %v612
        %v629 = vpack.c.bf16 %v615, %v614
        %v630 = vpack.c.bf16 %v617, %v616
        %v631 = vpack.c.bf16 %v619, %v618
        %v632 = vpack.c.bf16 %v621, %v620
        %v633 = vpack.c.bf16 %v623, %v622
        %v634 = vpack.c.bf16 %v625, %v624
        %s635 = sld [smem:[#allocation2]]
        %v636 = vstv %s635
        %v638 = vsel %vm488, %v626, 0
        %v641 = vsel %vm488, %v627, 0
        %v644 = vsel %vm488, %v628, 0
        %v647 = vsel %vm488, %v629, 0
        %v650 = vsel %vm488, %v630, 0
        %v653 = vsel %vm488, %v631, 0
        %v656 = vsel %vm488, %v632, 0
        %v659 = vsel %vm488, %v633, 0
        %v662 = vsel %vm488, %v634, 0
        %664 = vmatprep.subr.bf16.mxu0 0
        %665 = vmatpush1.bf16.xpose.msra.mxu0 %v662
        %666 = vmatprep.subr.bf16.mxu0 0
        %667 = vmatpush1.bf16.xpose.msra.mxu0 %v659
        %668 = vmatprep.subr.bf16.mxu0 0
        %669 = vmatpush1.bf16.xpose.msra.mxu0 %v656
        %670 = vmatprep.subr.bf16.mxu0 0
        %671 = vmatpush1.bf16.xpose.msra.mxu0 %v653
        %672 = vmatprep.subr.bf16.mxu0 0
        %673 = vmatpush1.bf16.xpose.msra.mxu0 %v650
        %674 = vmatprep.subr.bf16.mxu0 0
        %675 = vmatpush1.bf16.xpose.msra.mxu0 %v647
        %676 = vmatprep.subr.bf16.mxu0 0
        %677 = vmatpush1.bf16.xpose.msra.mxu0 %v644
        %678 = vmatprep.subr.bf16.mxu0 0
        %679 = vmatpush1.bf16.xpose.msra.mxu0 %v641
        %680 = vmatprep.subr.bf16.mxu0 0
        %681 = vmatpush2.bf16.xpose.msra.mxu0 0
        %682 = vmatprep.subr.bf16.mxu0 0
        %683 = vmatpush2.bf16.xpose.msra.mxu0 0
        %684 = vmatprep.subr.bf16.mxu0 0
        %685 = vmatpush2.bf16.xpose.msra.mxu0 0
        %686 = vmatprep.subr.bf16.mxu0 0
        %687 = vmatpush2.bf16.xpose.msra.mxu0 0
        %688 = vmatprep.subr.bf16.mxu0 0
        %689 = vmatpush2.bf16.xpose.msra.mxu0 0
        %690 = vmatprep.subr.bf16.mxu0 0
        %691 = vmatpush2.bf16.xpose.msra.mxu0 0
        %692 = vmatprep.subr.bf16.mxu0 0
        %693 = vmatpush2.bf16.xpose.msra.mxu0 0
        %694 = vmatprep.subr.bf16.mxu0 0
        %695 = vmatpush2.bf16.xpose.msra.mxu0 0
        %696 = vmatprep.mubr.bf16.mxu0 0
        %697 = vmatmul.mubr.bf16.gmra.mxu0 %v638
        %v698 = vpop.f32.mrf.mxu0
        %v699 = vadd.f32 %v636, %v698
        %v700 = vpop.f32.mrf.mxu0
        %v701 = vpop.f32.mrf.mxu0
        %v702 = vpop.f32.mrf.mxu0
        %703 = vdwg.mxu0
        %704 = vst [vmem:[%s272] sm:$0x1] %v699
        %s705 = sand.u32 %s182, 1
        %s706 = scalar_lea.sflag [#allocation4], %s705
        %s707 = sand.u32 %s182, 1
        %s708 = scalar_lea.vmem [#allocation3], %s707
        // Predicated region
        $region49: #{tpu_custom_call.1} parent=47 // pred_check
          %p709 = pneg %p192
        $region50: #{tpu_custom_call.1} parent=47 // pred_check_branch
          %711 = sbr.rel (%p709) target = $region52
        $region51: #{tpu_custom_call.1} parent=47 // pred_region
          %s713 = ssub.s32 16, 16
          %714 = vsyncadd %s706, %s713
          %s715 = smul.addr %s22, 16
          %s716 = scalar_lea.hbm %s7, %s715
          %s718 = sshll.u32 %s708, 4
          %s719 = int_to_ptr.vmem [resolvable:$true] %s718
          %721 = dma.vmem_to_hbm [thread:$0]  %s719, 16, %s716, %s706
        $region52: #{tpu_custom_call.1} parent=47 // pred_fallthru
          _
      $region48: #{tpu_custom_call.1} parent=5 // pred_fallthru
        _
      %p722 = scmp.le.s32.totalorder 2, %s17
      // Predicated region
      $region53: #{tpu_custom_call.1} parent=5 // pred_check
        %p723 = pneg %p722
      $region54: #{tpu_custom_call.1} parent=5 // pred_check_branch
        %725 = sbr.rel (%p723) target = $region56
      $region55: #{tpu_custom_call.1} parent=5 // pred_region
        %s726 = ssub.s32 %s17, 2
        // Predicated region
        $region57: #{tpu_custom_call.1} parent=55 // pred_check
          %p727 = pneg %p198
        $region58: #{tpu_custom_call.1} parent=55 // pred_check_branch
          %729 = sbr.rel (%p727) target = $region60
        $region59: #{tpu_custom_call.1} parent=55 // pred_region
          %s730 = sand.u32 %s183, 1
          %s731 = scalar_lea.sflag [#allocation4], %s730
          %s732 = sand.u32 %s183, 1
          %s733 = scalar_lea.vmem [#allocation3], %s732
          %734 = dma.done %s731, 16
        $region60: #{tpu_custom_call.1} parent=55 // pred_fallthru
          _
      $region56: #{tpu_custom_call.1} parent=5 // pred_fallthru
        _
    $region6: #{tpu_custom_call.1} parent=1 // loop_footer
      %s21 = sadd.s32 1, %s17
    $region7: #{tpu_custom_call.1} parent=1 // loop_footer_branch
      %16 = sbr.rel target = $region3
    $region8: #{tpu_custom_call.1} parent=1 // loop_exit
      _
    %735 = vsyncpa [#allocation4], 1
    %s736 = scalar_lea.sflag [#allocation4], 1
    %737 = vsyncpa %s736, 1

// kernel: tpu_custom_call.1
$region0: #{tpu_custom_call.1}
  #allocation0 [shape = 'u32[]', space=smem, size = 0x4, offset = 0x4, fixed_abs, tag = 'smem constant byte address 0x4 - core index']
  #allocation1 [shape = 'u32[144,128]{1,0:T(1,128)}', space=vmem, size = 0x12000, scoped, tag = 'internal scratch']
  #allocation2 [shape = 'f32[1]{0:T(128)S(6)}', space=smem, size = 0x200, scoped, tag = 'scoped memory for tpu_custom_call.1']
  %s0 = inlined_call_operand.vmem [shape: f32[256,16], index: 0, kind: input, shape index: {}]
  %s1 = inlined_call_operand.vmem [shape: bf16[16,32], index: 1, kind: input, shape index: {}]
  %s2 = inlined_call_operand.vmem [shape: f32[1,32], index: 2, kind: input, shape index: {}]
  %s3 = inlined_call_operand.vmem [shape: bf16[32,32], index: 3, kind: input, shape index: {}]
  %s4 = inlined_call_operand.vmem [shape: f32[1,32], index: 4, kind: input, shape index: {}]
  %s5 = inlined_call_operand.vmem [shape: bf16[1,32], index: 5, kind: input, shape index: {}]
  %s6 = inlined_call_operand.<no memory space> [shape: f32[1], index: 6, kind: input, shape index: {}]
  %s7 = inlined_call_operand.hbm [shape: f32[1,256], index: 7, kind: output, shape index: {}]
  %s8 = sld [smem:[#allocation0]]
  $region61: #{tpu_custom_call.1} parent=0
    _
  %s10 = ssub.s32 1, %s8
  %s11 = scalar_select 0, %s10, %s8
  %12 = sst [smem:[#allocation2]] %s6
  $region1: #{tpu_custom_call.1} parent=0
    #allocation3 [shape = 'u8[1024]{0}', space=vmem, size = 0x400, scoped, tag = 'output window, operand 0']
    #allocation4 [shape = 's32[2]{0}', space=sflag, size = 0x8, scoped, tag = 'scoped memory for tpu_custom_call.1']
    %13 = vsyncpa [#allocation4], 0
    %s14 = scalar_lea.sflag [#allocation4], 1
    %15 = vsyncpa %s14, 0
    loop: start=0, step=1, limit=4
    $region2: #{tpu_custom_call.1} parent=1 // loop_pre_header
      _
    $region3: #{tpu_custom_call.1} parent=1 // loop_header
      %s17 = sphi 0, %s21
      %p18 = scmp.ge.s32.totalorder %s17, 4
      %s27 = sphi 0, %s29
      %s30 = sphi 0, %s27
      %s31 = sphi 0, %s30
      %s47 = sphi 0, %s31
      %s51 = sphi 0, %s51
      %s53 = sphi 0, %s51
      %s54 = sphi 0, %s53
      %s68 = sphi 0, %s54
      %s72 = sphi 0, %s72
      %s74 = sphi 0, %s72
      %s75 = sphi 0, %s74
      %s89 = sphi 0, %s75
      %s93 = sphi 0, %s93
      %s95 = sphi 0, %s93
      %s96 = sphi 0, %s95
      %s110 = sphi 0, %s96
      %s114 = sphi 0, %s114
      %s116 = sphi 0, %s114
      %s117 = sphi 0, %s116
      %s131 = sphi 0, %s117
      %s135 = sphi 0, %s135
      %s137 = sphi 0, %s135
      %s138 = sphi 0, %s137
      %s152 = sphi 0, %s138
      %s156 = sphi 0, %s156
      %s158 = sphi 0, %s156
      %s159 = sphi 0, %s158
      %s173 = sphi 0, %s159
      %s179 = sphi 0, %s181
      %s182 = sphi 0, %s179
      %s183 = sphi 0, %s182
      %s199 = sphi 0, %s183
    $region4: #{tpu_custom_call.1} parent=1 // loop_header_branch
      %20 = sbr.rel (%p18) target = $region8
    $region5: #{tpu_custom_call.1} parent=1 // loop_body
      %s22 = ssub.s32 %s17, 1
      %s23 = ssub.s32 %s17, 2
      %s24 = sadd.s32 %s17, 1
      %s25 = ssub.s32 %s17, %s24
      %p26 = scmp.eq.s32.totalorder %s25, 0
      %s28 = sadd.s32 %s27, 1
      %s29 = scalar_select %p26, %s27, %s28
      %p32 = pneg %p26
      %p33 = scmp.eq.s32.totalorder %s17, 1
      %p34 = por %p32, %p33
      %p35 = scmp.ne.s32.totalorder %s27, %s30
      %p36 = scmp.eq.s32.totalorder %s17, 0
      %p37 = por %p35, %p36
      %p38 = scmp.ne.s32.totalorder %s27, %s30
      %p39 = scmp.eq.s32.totalorder %s22, 1
      %p40 = por %p38, %p39
      %p41 = scmp.ne.s32.totalorder %s30, %s31
      %p42 = scmp.eq.s32.totalorder %s22, 0
      %p43 = por %p41, %p42
      %p44 = scmp.ne.s32.totalorder %s30, %s31
      %p45 = scmp.eq.s32.totalorder %s23, 1
      %p46 = por %p44, %p45
      %p48 = scmp.ne.s32.totalorder %s31, %s47
      %p49 = scmp.eq.s32.totalorder %s23, 0
      %p50 = por %p48, %p49
      %s52 = sadd.s32 %s51, 1
      %p55 = scmp.eq.s32.totalorder %s17, 1
      %p56 = scmp.ne.s32.totalorder %s51, %s53
      %p57 = scmp.eq.s32.totalorder %s17, 0
      %p58 = por %p56, %p57
      %p59 = scmp.ne.s32.totalorder %s51, %s53
      %p60 = scmp.eq.s32.totalorder %s22, 1
      %p61 = por %p59, %p60
      %p62 = scmp.ne.s32.totalorder %s53, %s54
      %p63 = scmp.eq.s32.totalorder %s22, 0
      %p64 = por %p62, %p63
      %p65 = scmp.ne.s32.totalorder %s53, %s54
      %p66 = scmp.eq.s32.totalorder %s23, 1
      %p67 = por %p65, %p66
      %p69 = scmp.ne.s32.totalorder %s54, %s68
      %p70 = scmp.eq.s32.totalorder %s23, 0
      %p71 = por %p69, %p70
      %s73 = sadd.s32 %s72, 1
      %p76 = scmp.eq.s32.totalorder %s17, 1
      %p77 = scmp.ne.s32.totalorder %s72, %s74
      %p78 = scmp.eq.s32.totalorder %s17, 0
      %p79 = por %p77, %p78
      %p80 = scmp.ne.s32.totalorder %s72, %s74
      %p81 = scmp.eq.s32.totalorder %s22, 1
      %p82 = por %p80, %p81
      %p83 = scmp.ne.s32.totalorder %s74, %s75
      %p84 = scmp.eq.s32.totalorder %s22, 0
      %p85 = por %p83, %p84
      %p86 = scmp.ne.s32.totalorder %s74, %s75
      %p87 = scmp.eq.s32.totalorder %s23, 1
      %p88 = por %p86, %p87
      %p90 = scmp.ne.s32.totalorder %s75, %s89
      %p91 = scmp.eq.s32.totalorder %s23, 0
      %p92 = por %p90, %p91
      %s94 = sadd.s32 %s93, 1
      %p97 = scmp.eq.s32.totalorder %s17, 1
      %p98 = scmp.ne.s32.totalorder %s93, %s95
      %p99 = scmp.eq.s32.totalorder %s17, 0
      %p100 = por %p98, %p99
      %p101 = scmp.ne.s32.totalorder %s93, %s95
      %p102 = scmp.eq.s32.totalorder %s22, 1
      %p103 = por %p101, %p102
      %p104 = scmp.ne.s32.totalorder %s95, %s96
      %p105 = scmp.eq.s32.totalorder %s22, 0
      %p106 = por %p104, %p105
      %p107 = scmp.ne.s32.totalorder %s95, %s96
      %p108 = scmp.eq.s32.totalorder %s23, 1
      %p109 = por %p107, %p108
      %p111 = scmp.ne.s32.totalorder %s96, %s110
      %p112 = scmp.eq.s32.totalorder %s23, 0
      %p113 = por %p111, %p112
      %s115 = sadd.s32 %s114, 1
      %p118 = scmp.eq.s32.totalorder %s17, 1
      %p119 = scmp.ne.s32.totalorder %s114, %s116
      %p120 = scmp.eq.s32.totalorder %s17, 0
      %p121 = por %p119, %p120
      %p122 = scmp.ne.s32.totalorder %s114, %s116
      %p123 = scmp.eq.s32.totalorder %s22, 1
      %p124 = por %p122, %p123
      %p125 = scmp.ne.s32.totalorder %s116, %s117
      %p126 = scmp.eq.s32.totalorder %s22, 0
      %p127 = por %p125, %p126
      %p128 = scmp.ne.s32.totalorder %s116, %s117
      %p129 = scmp.eq.s32.totalorder %s23, 1
      %p130 = por %p128, %p129
      %p132 = scmp.ne.s32.totalorder %s117, %s131
      %p133 = scmp.eq.s32.totalorder %s23, 0
      %p134 = por %p132, %p133
      %s136 = sadd.s32 %s135, 1
      %p139 = scmp.eq.s32.totalorder %s17, 1
      %p140 = scmp.ne.s32.totalorder %s135, %s137
      %p141 = scmp.eq.s32.totalorder %s17, 0
      %p142 = por %p140, %p141
      %p143 = scmp.ne.s32.totalorder %s135, %s137
      %p144 = scmp.eq.s32.totalorder %s22, 1
      %p145 = por %p143, %p144
      %p146 = scmp.ne.s32.totalorder %s137, %s138
      %p147 = scmp.eq.s32.totalorder %s22, 0
      %p148 = por %p146, %p147
      %p149 = scmp.ne.s32.totalorder %s137, %s138
      %p150 = scmp.eq.s32.totalorder %s23, 1
      %p151 = por %p149, %p150
      %p153 = scmp.ne.s32.totalorder %s138, %s152
      %p154 = scmp.eq.s32.totalorder %s23, 0
      %p155 = por %p153, %p154
      %s157 = sadd.s32 %s156, 1
      %p160 = scmp.eq.s32.totalorder %s17, 1
      %p161 = scmp.ne.s32.totalorder %s156, %s158
      %p162 = scmp.eq.s32.totalorder %s17, 0
      %p163 = por %p161, %p162
      %p164 = scmp.ne.s32.totalorder %s156, %s158
      %p165 = scmp.eq.s32.totalorder %s22, 1
      %p166 = por %p164, %p165
      %p167 = scmp.ne.s32.totalorder %s158, %s159
      %p168 = scmp.eq.s32.totalorder %s22, 0
      %p169 = por %p167, %p168
      %p170 = scmp.ne.s32.totalorder %s158, %s159
      %p171 = scmp.eq.s32.totalorder %s23, 1
      %p172 = por %p170, %p171
      %p174 = scmp.ne.s32.totalorder %s159, %s173
      %p175 = scmp.eq.s32.totalorder %s23, 0
      %p176 = por %p174, %p175
      %s177 = ssub.s32 %s17, %s24
      %p178 = scmp.eq.s32.totalorder %s177, 0
      %s180 = sadd.s32 %s179, 1
      %s181 = scalar_select %p178, %s179, %s180
      %p184 = pneg %p178
      %p185 = scmp.eq.s32.totalorder %s17, 1
      %p186 = por %p184, %p185
      %p187 = scmp.ne.s32.totalorder %s179, %s182
      %p188 = scmp.eq.s32.totalorder %s17, 0
      %p189 = por %p187, %p188
      %p190 = scmp.ne.s32.totalorder %s179, %s182
      %p191 = scmp.eq.s32.totalorder %s22, 1
      %p192 = por %p190, %p191
      %p193 = scmp.ne.s32.totalorder %s182, %s183
      %p194 = scmp.eq.s32.totalorder %s22, 0
      %p195 = por %p193, %p194
      %p196 = scmp.ne.s32.totalorder %s182, %s183
      %p197 = scmp.eq.s32.totalorder %s23, 1
      %p198 = por %p196, %p197
      %p200 = scmp.ne.s32.totalorder %s183, %s199
      %p201 = scmp.eq.s32.totalorder %s23, 0
      %p202 = por %p200, %p201
      %p203 = scmp.le.s32.totalorder 1, %s17
      %p204 = scmp.lt.s32.totalorder %s17, 3
      %p205 = pnand %p203, %p204
      %p206 = pneg %p205
      // Predicated region
      $region9: #{tpu_custom_call.1} parent=5 // pred_check
        _
      $region10: #{tpu_custom_call.1} parent=5 // pred_check_branch
        %208 = sbr.rel (%p205) target = $region12
      $region11: #{tpu_custom_call.1} parent=5 // pred_region
        %s209 = ssub.s32 %s17, 1
        // Predicated region
        $region13: #{tpu_custom_call.1} parent=11 // pred_check
          %p210 = pneg %p64
        $region14: #{tpu_custom_call.1} parent=11 // pred_check_branch
          %212 = sbr.rel (%p210) target = $region16
        $region15: #{tpu_custom_call.1} parent=11 // pred_region
          _
        $region16: #{tpu_custom_call.1} parent=11 // pred_fallthru
          _
        // Predicated region
        $region17: #{tpu_custom_call.1} parent=11 // pred_check
          %p213 = pneg %p85
        $region18: #{tpu_custom_call.1} parent=11 // pred_check_branch
          %215 = sbr.rel (%p213) target = $region20
        $region19: #{tpu_custom_call.1} parent=11 // pred_region
          _
        $region20: #{tpu_custom_call.1} parent=11 // pred_fallthru
          _
        // Predicated region
        $region21: #{tpu_custom_call.1} parent=11 // pred_check
          %p216 = pneg %p106
        $region22: #{tpu_custom_call.1} parent=11 // pred_check_branch
          %218 = sbr.rel (%p216) target = $region24
        $region23: #{tpu_custom_call.1} parent=11 // pred_region
          _
        $region24: #{tpu_custom_call.1} parent=11 // pred_fallthru
          _
        // Predicated region
        $region25: #{tpu_custom_call.1} parent=11 // pred_check
          %p219 = pneg %p127
        $region26: #{tpu_custom_call.1} parent=11 // pred_check_branch
          %221 = sbr.rel (%p219) target = $region28
        $region27: #{tpu_custom_call.1} parent=11 // pred_region
          _
        $region28: #{tpu_custom_call.1} parent=11 // pred_fallthru
          _
        // Predicated region
        $region29: #{tpu_custom_call.1} parent=11 // pred_check
          %p222 = pneg %p148
        $region30: #{tpu_custom_call.1} parent=11 // pred_check_branch
          %224 = sbr.rel (%p222) target = $region32
        $region31: #{tpu_custom_call.1} parent=11 // pred_region
          _
        $region32: #{tpu_custom_call.1} parent=11 // pred_fallthru
          _
        // Predicated region
        $region33: #{tpu_custom_call.1} parent=11 // pred_check
          %p225 = pneg %p169
        $region34: #{tpu_custom_call.1} parent=11 // pred_check_branch
          %227 = sbr.rel (%p225) target = $region36
        $region35: #{tpu_custom_call.1} parent=11 // pred_region
          _
        $region36: #{tpu_custom_call.1} parent=11 // pred_fallthru
          _
      $region12: #{tpu_custom_call.1} parent=5 // pred_fallthru
        _
      %p228 = scmp.lt.s32.totalorder %s17, 2
      // Predicated region
      $region37: #{tpu_custom_call.1} parent=5 // pred_check
        %p229 = pneg %p228
      $region38: #{tpu_custom_call.1} parent=5 // pred_check_branch
        %231 = sbr.rel (%p229) target = $region40
      $region39: #{tpu_custom_call.1} parent=5 // pred_region
        // Predicated region
        $region41: #{tpu_custom_call.1} parent=39 // pred_check
          %p232 = pneg %p37
        $region42: #{tpu_custom_call.1} parent=39 // pred_check_branch
          %234 = sbr.rel (%p232) target = $region44
        $region43: #{tpu_custom_call.1} parent=39 // pred_region
          %s235 = smul.u32 16, %s17
          %p236 = scmp.lt.s32.totalorder %s235, 31
          %s237 = scalar_select %p236, %s235, 31
          %s238 = smul.addr %s237, 8
          %s239 = scalar_lea.vmem %s0, %s238
          %s240 = smul.u32 16, %s17
        $region44: #{tpu_custom_call.1} parent=39 // pred_fallthru
          _
      $region40: #{tpu_custom_call.1} parent=5 // pred_fallthru
        _
      %p241 = scmp.le.s32.totalorder 1, %s17
      %p242 = scmp.lt.s32.totalorder %s17, 3
      %p243 = pnand %p241, %p242
      %p244 = pneg %p243
      // Predicated region
      $region45: #{tpu_custom_call.1} parent=5 // pred_check
        _
      $region46: #{tpu_custom_call.1} parent=5 // pred_check_branch
        %246 = sbr.rel (%p243) target = $region48
      $region47: #{tpu_custom_call.1} parent=5 // pred_region
        %s247 = ssub.s32 %s17, 1
        %s248 = smul.u32 16, %s22
        %p249 = scmp.lt.s32.totalorder %s248, 31
        %s250 = scalar_select %p249, %s248, 31
        %s251 = smul.addr %s250, 8
        %s252 = scalar_lea.vmem %s0, %s251
        %p253 = pneg %p43
        %p254 = pneg %p40
        %p255 = pneg %p64
        %p256 = pneg %p61
        %p257 = pneg %p85
        %p258 = pneg %p82
        %p259 = pneg %p106
        %p260 = pneg %p103
        %p261 = pneg %p127
        %p262 = pneg %p124
        %p263 = pneg %p148
        %p264 = pneg %p145
        %p265 = pneg %p169
        %p266 = pneg %p166
        %p267 = pneg %p195
        %p268 = pneg %p192
        %s269 = sand.u32 %s182, 1
        %s270 = scalar_lea.sflag [#allocation4], %s269
        %s271 = sand.u32 %s182, 1
        %s272 = scalar_lea.vmem [#allocation3], %s271
        %s273 = smul.u32 16, %s22
        %p274 = scmp.lt.s32.totalorder %s273, 31
        %s275 = scalar_select %p274, %s273, 31
        %s276 = smul.addr %s275, 8
        %s277 = scalar_lea.vmem %s0, %s276
        %s278 = smul.u32 16, %s22
        %v280 = vld [vmem:[%s277] sm:$0xff]
        %v281 = vld [vmem:[%s277 + $0x8] sm:$0xff]
        %v282 = vld [vmem:[%s277 + $0x10] sm:$0xff]
        %v283 = vld [vmem:[%s277 + $0x18] sm:$0xff]
        %v284 = vld [vmem:[%s277 + $0x20] sm:$0xff]
        %v285 = vld [vmem:[%s277 + $0x28] sm:$0xff]
        %v286 = vld [vmem:[%s277 + $0x30] sm:$0xff]
        %v287 = vld [vmem:[%s277 + $0x38] sm:$0xff]
        %v288 = vld [vmem:[%s277 + $0x40] sm:$0xff]
        %v289 = vld [vmem:[%s277 + $0x48] sm:$0xff]
        %v290 = vld [vmem:[%s277 + $0x50] sm:$0xff]
        %v291 = vld [vmem:[%s277 + $0x58] sm:$0xff]
        %v292 = vld [vmem:[%s277 + $0x60] sm:$0xff]
        %v293 = vld [vmem:[%s277 + $0x68] sm:$0xff]
        %v294 = vld [vmem:[%s277 + $0x70] sm:$0xff]
        %v295 = vld [vmem:[%s277 + $0x78] sm:$0xff]
        %v296 = vpack.c.bf16 %v281, %v280
        %v297 = vpack.c.bf16 %v283, %v282
        %v298 = vpack.c.bf16 %v285, %v284
        %v299 = vpack.c.bf16 %v287, %v286
        %v300 = vpack.c.bf16 %v289, %v288
        %v301 = vpack.c.bf16 %v291, %v290
        %v302 = vpack.c.bf16 %v293, %v292
        %v303 = vpack.c.bf16 %v295, %v294
        %v304 = vld [vmem:[%s1] sm:$0xf]
        %v305 = vld [vmem:[%s1 + $0x4] sm:$0xf]
        %v306 = vld [vmem:[%s2] sm:$0x1]
        %v308 = vlaneseq
        %v309 = vshrl.u32 %v308, 7
        %v310 = vsub.s32 0, %v309
        %v311 = vrot.slane %v306, %v310
        %v315 = vunpack.c.l.b16 %v304
        %v316 = vunpack.c.l.b16 %v305
        %v317 = vpack.c.b16 %v316, %v315
        %vm319 = vcmask 130048
        %v321 = vsel %vm319, %v296, 0
        %v324 = vsel %vm319, %v297, 0
        %v327 = vsel %vm319, %v298, 0
        %v330 = vsel %vm319, %v299, 0
        %v333 = vsel %vm319, %v300, 0
        %v336 = vsel %vm319, %v301, 0
        %v339 = vsel %vm319, %v302, 0
        %v342 = vsel %vm319, %v303, 0
        %344 = vmatprep.subr.bf16.mxu0 0
        %345 = vmatpush1.bf16.msra.mxu0 0
        %346 = vmatprep.subr.bf16.mxu0 0
        %347 = vmatpush1.bf16.msra.mxu0 0
        %348 = vmatprep.subr.bf16.mxu0 0
        %349 = vmatpush1.bf16.msra.mxu0 0
        %350 = vmatprep.subr.bf16.mxu0 0
        %351 = vmatpush1.bf16.msra.mxu0 0
        %352 = vmatprep.subr.bf16.mxu0 0
        %353 = vmatpush1.bf16.msra.mxu0 0
        %354 = vmatprep.subr.bf16.mxu0 0
        %355 = vmatpush1.bf16.msra.mxu0 0
        %356 = vmatprep.subr.bf16.mxu0 0
        %357 = vmatpush1.bf16.msra.mxu0 0
        %358 = vmatprep.subr.bf16.mxu0 0
        %359 = vmatpush1.bf16.msra.mxu0 %v317
        %360 = vmatprep.subr.bf16.mxu0 0
        %361 = vmatpush2.bf16.msra.mxu0 0
        %362 = vmatprep.subr.bf16.mxu0 0
        %363 = vmatpush2.bf16.msra.mxu0 0
        %364 = vmatprep.subr.bf16.mxu0 0
        %365 = vmatpush2.bf16.msra.mxu0 0
        %366 = vmatprep.subr.bf16.mxu0 0
        %367 = vmatpush2.bf16.msra.mxu0 0
        %368 = vmatprep.subr.bf16.mxu0 0
        %369 = vmatpush2.bf16.msra.mxu0 0
        %370 = vmatprep.subr.bf16.mxu0 0
        %371 = vmatpush2.bf16.msra.mxu0 0
        %372 = vmatprep.subr.bf16.mxu0 0
        %373 = vmatpush2.bf16.msra.mxu0 0
        %374 = vmatprep.subr.bf16.mxu0 0
        %375 = vmatpush2.bf16.msra.mxu0 0
        %376 = vmatprep.mubr.bf16.mxu0 0
        %377 = vmatmul.mubr.bf16.gmra.mxu0 %v321
        %v378 = vpop.f32.mrf.mxu0
        %v379 = vadd.f32 %v311, %v378
        %v380 = vpop.f32.mrf.mxu0
        %v381 = vpop.f32.mrf.mxu0
        %v382 = vadd.f32 %v311, %v381
        %v383 = vpop.f32.mrf.mxu0
        %384 = vmatprep.mubr.bf16.mxu0 0
        %385 = vmatmul.mubr.bf16.gmra.mxu0 %v324
        %v386 = vpop.f32.mrf.mxu0
        %v387 = vadd.f32 %v311, %v386
        %v388 = vpop.f32.mrf.mxu0
        %v389 = vpop.f32.mrf.mxu0
        %v390 = vadd.f32 %v311, %v389
        %v391 = vpop.f32.mrf.mxu0
        %392 = vmatprep.mubr.bf16.mxu0 0
        %393 = vmatmul.mubr.bf16.gmra.mxu0 %v327
        %v394 = vpop.f32.mrf.mxu0
        %v395 = vadd.f32 %v311, %v394
        %v396 = vpop.f32.mrf.mxu0
        %v397 = vpop.f32.mrf.mxu0
        %v398 = vadd.f32 %v311, %v397
        %v399 = vpop.f32.mrf.mxu0
        %400 = vmatprep.mubr.bf16.mxu0 0
        %401 = vmatmul.mubr.bf16.gmra.mxu0 %v330
        %v402 = vpop.f32.mrf.mxu0
        %v403 = vadd.f32 %v311, %v402
        %v404 = vpop.f32.mrf.mxu0
        %v405 = vpop.f32.mrf.mxu0
        %v406 = vadd.f32 %v311, %v405
        %v407 = vpop.f32.mrf.mxu0
        %408 = vmatprep.mubr.bf16.mxu0 0
        %409 = vmatmul.mubr.bf16.gmra.mxu0 %v333
        %v410 = vpop.f32.mrf.mxu0
        %v411 = vadd.f32 %v311, %v410
        %v412 = vpop.f32.mrf.mxu0
        %v413 = vpop.f32.mrf.mxu0
        %v414 = vadd.f32 %v311, %v413
        %v415 = vpop.f32.mrf.mxu0
        %416 = vmatprep.mubr.bf16.mxu0 0
        %417 = vmatmul.mubr.bf16.gmra.mxu0 %v336
        %v418 = vpop.f32.mrf.mxu0
        %v419 = vadd.f32 %v311, %v418
        %v420 = vpop.f32.mrf.mxu0
        %v421 = vpop.f32.mrf.mxu0
        %v422 = vadd.f32 %v311, %v421
        %v423 = vpop.f32.mrf.mxu0
        %424 = vmatprep.mubr.bf16.mxu0 0
        %425 = vmatmul.mubr.bf16.gmra.mxu0 %v339
        %v426 = vpop.f32.mrf.mxu0
        %v427 = vadd.f32 %v311, %v426
        %v428 = vpop.f32.mrf.mxu0
        %v429 = vpop.f32.mrf.mxu0
        %v430 = vadd.f32 %v311, %v429
        %v431 = vpop.f32.mrf.mxu0
        %432 = vmatprep.mubr.bf16.mxu0 0
        %433 = vmatmul.mubr.bf16.gmra.mxu0 %v342
        %v434 = vpop.f32.mrf.mxu0
        %v435 = vadd.f32 %v311, %v434
        %v436 = vpop.f32.mrf.mxu0
        %v437 = vpop.f32.mrf.mxu0
        %v438 = vadd.f32 %v311, %v437
        %v439 = vpop.f32.mrf.mxu0
        %440 = vdwg.mxu0
        %v441 = vtanh.pop %v379
        %v442 = vtanh.pop %v382
        %v443 = vtanh.pop %v387
        %v444 = vtanh.pop %v390
        %v445 = vtanh.pop %v395
        %v446 = vtanh.pop %v398
        %v447 = vtanh.pop %v403
        %v448 = vtanh.pop %v406
        %v449 = vtanh.pop %v411
        %v450 = vtanh.pop %v414
        %v451 = vtanh.pop %v419
        %v452 = vtanh.pop %v422
        %v453 = vtanh.pop %v427
        %v454 = vtanh.pop %v430
        %v455 = vtanh.pop %v435
        %v456 = vtanh.pop %v438
        %v457 = vpack.c.bf16 %v442, %v441
        %v458 = vpack.c.bf16 %v444, %v443
        %v459 = vpack.c.bf16 %v446, %v445
        %v460 = vpack.c.bf16 %v448, %v447
        %v461 = vpack.c.bf16 %v450, %v449
        %v462 = vpack.c.bf16 %v452, %v451
        %v463 = vpack.c.bf16 %v454, %v453
        %v464 = vpack.c.bf16 %v456, %v455
        %v465 = vld [vmem:[%s3] sm:$0xf]
        %v466 = vld [vmem:[%s3 + $0x4] sm:$0xf]
        %v467 = vld [vmem:[%s3 + $0x8] sm:$0xf]
        %v468 = vld [vmem:[%s3 + $0xc] sm:$0xf]
        %v469 = vld [vmem:[%s4] sm:$0x1]
        %v471 = vlaneseq
        %v472 = vshrl.u32 %v471, 7
        %v473 = vsub.s32 0, %v472
        %v474 = vrot.slane %v469, %v473
        %v480 = vunpack.c.l.b16 %v465
        %v481 = vunpack.c.l.b16 %v466
        %v482 = vunpack.c.l.b16 %v467
        %v483 = vunpack.c.l.b16 %v468
        %v484 = vpack.c.b16 %v481, %v480
        %v485 = vpack.c.b16 %v483, %v482
        %vm488 = vcmask 261120
        %v490 = vsel %vm488, %v457, 0
        %v493 = vsel %vm488, %v458, 0
        %v496 = vsel %vm488, %v459, 0
        %v499 = vsel %vm488, %v460, 0
        %v502 = vsel %vm488, %v461, 0
        %v505 = vsel %vm488, %v462, 0
        %v508 = vsel %vm488, %v463, 0
        %v511 = vsel %vm488, %v464, 0
        %513 = vmatprep.subr.bf16.mxu0 0
        %514 = vmatpush1.bf16.msra.mxu0 0
        %515 = vmatprep.subr.bf16.mxu0 0
        %516 = vmatpush1.bf16.msra.mxu0 0
        %517 = vmatprep.subr.bf16.mxu0 0
        %518 = vmatpush1.bf16.msra.mxu0 0
        %519 = vmatprep.subr.bf16.mxu0 0
        %520 = vmatpush1.bf16.msra.mxu0 0
        %521 = vmatprep.subr.bf16.mxu0 0
        %522 = vmatpush1.bf16.msra.mxu0 0
        %523 = vmatprep.subr.bf16.mxu0 0
        %524 = vmatpush1.bf16.msra.mxu0 0
        %525 = vmatprep.subr.bf16.mxu0 0
        %526 = vmatpush1.bf16.msra.mxu0 %v485
        %527 = vmatprep.subr.bf16.mxu0 0
        %528 = vmatpush1.bf16.msra.mxu0 %v484
        %529 = vmatprep.subr.bf16.mxu0 0
        %530 = vmatpush2.bf16.msra.mxu0 0
        %531 = vmatprep.subr.bf16.mxu0 0
        %532 = vmatpush2.bf16.msra.mxu0 0
        %533 = vmatprep.subr.bf16.mxu0 0
        %534 = vmatpush2.bf16.msra.mxu0 0
        %535 = vmatprep.subr.bf16.mxu0 0
        %536 = vmatpush2.bf16.msra.mxu0 0
        %537 = vmatprep.subr.bf16.mxu0 0
        %538 = vmatpush2.bf16.msra.mxu0 0
        %539 = vmatprep.subr.bf16.mxu0 0
        %540 = vmatpush2.bf16.msra.mxu0 0
        %541 = vmatprep.subr.bf16.mxu0 0
        %542 = vmatpush2.bf16.msra.mxu0 0
        %543 = vmatprep.subr.bf16.mxu0 0
        %544 = vmatpush2.bf16.msra.mxu0 0
        %545 = vmatprep.mubr.bf16.mxu0 0
        %546 = vmatmul.mubr.bf16.gmra.mxu0 %v490
        %v547 = vpop.f32.mrf.mxu0
        %v548 = vadd.f32 %v474, %v547
        %v549 = vpop.f32.mrf.mxu0
        %v550 = vpop.f32.mrf.mxu0
        %v551 = vadd.f32 %v474, %v550
        %v552 = vpop.f32.mrf.mxu0
        %553 = vmatprep.mubr.bf16.mxu0 0
        %554 = vmatmul.mubr.bf16.gmra.mxu0 %v493
        %v555 = vpop.f32.mrf.mxu0
        %v556 = vadd.f32 %v474, %v555
        %v557 = vpop.f32.mrf.mxu0
        %v558 = vpop.f32.mrf.mxu0
        %v559 = vadd.f32 %v474, %v558
        %v560 = vpop.f32.mrf.mxu0
        %561 = vmatprep.mubr.bf16.mxu0 0
        %562 = vmatmul.mubr.bf16.gmra.mxu0 %v496
        %v563 = vpop.f32.mrf.mxu0
        %v564 = vadd.f32 %v474, %v563
        %v565 = vpop.f32.mrf.mxu0
        %v566 = vpop.f32.mrf.mxu0
        %v567 = vadd.f32 %v474, %v566
        %v568 = vpop.f32.mrf.mxu0
        %569 = vmatprep.mubr.bf16.mxu0 0
        %570 = vmatmul.mubr.bf16.gmra.mxu0 %v499
        %v571 = vpop.f32.mrf.mxu0
        %v572 = vadd.f32 %v474, %v571
        %v573 = vpop.f32.mrf.mxu0
        %v574 = vpop.f32.mrf.mxu0
        %v575 = vadd.f32 %v474, %v574
        %v576 = vpop.f32.mrf.mxu0
        %577 = vmatprep.mubr.bf16.mxu0 0
        %578 = vmatmul.mubr.bf16.gmra.mxu0 %v502
        %v579 = vpop.f32.mrf.mxu0
        %v580 = vadd.f32 %v474, %v579
        %v581 = vpop.f32.mrf.mxu0
        %v582 = vpop.f32.mrf.mxu0
        %v583 = vadd.f32 %v474, %v582
        %v584 = vpop.f32.mrf.mxu0
        %585 = vmatprep.mubr.bf16.mxu0 0
        %586 = vmatmul.mubr.bf16.gmra.mxu0 %v505
        %v587 = vpop.f32.mrf.mxu0
        %v588 = vadd.f32 %v474, %v587
        %v589 = vpop.f32.mrf.mxu0
        %v590 = vpop.f32.mrf.mxu0
        %v591 = vadd.f32 %v474, %v590
        %v592 = vpop.f32.mrf.mxu0
        %593 = vmatprep.mubr.bf16.mxu0 0
        %594 = vmatmul.mubr.bf16.gmra.mxu0 %v508
        %v595 = vpop.f32.mrf.mxu0
        %v596 = vadd.f32 %v474, %v595
        %v597 = vpop.f32.mrf.mxu0
        %v598 = vpop.f32.mrf.mxu0
        %v599 = vadd.f32 %v474, %v598
        %v600 = vpop.f32.mrf.mxu0
        %601 = vmatprep.mubr.bf16.mxu0 0
        %602 = vmatmul.mubr.bf16.gmra.mxu0 %v511
        %v603 = vpop.f32.mrf.mxu0
        %v604 = vadd.f32 %v474, %v603
        %v605 = vpop.f32.mrf.mxu0
        %v606 = vpop.f32.mrf.mxu0
        %v607 = vadd.f32 %v474, %v606
        %v608 = vpop.f32.mrf.mxu0
        %609 = vdwg.mxu0
        %v610 = vtanh.pop %v548
        %v611 = vtanh.pop %v551
        %v612 = vtanh.pop %v556
        %v613 = vtanh.pop %v559
        %v614 = vtanh.pop %v564
        %v615 = vtanh.pop %v567
        %v616 = vtanh.pop %v572
        %v617 = vtanh.pop %v575
        %v618 = vtanh.pop %v580
        %v619 = vtanh.pop %v583
        %v620 = vtanh.pop %v588
        %v621 = vtanh.pop %v591
        %v622 = vtanh.pop %v596
        %v623 = vtanh.pop %v599
        %v624 = vtanh.pop %v604
        %v625 = vtanh.pop %v607
        %v626 = vld [vmem:[%s5] sm:$0x1]
        %v627 = vpack.c.bf16 %v611, %v610
        %v628 = vpack.c.bf16 %v613, %v612
        %v629 = vpack.c.bf16 %v615, %v614
        %v630 = vpack.c.bf16 %v617, %v616
        %v631 = vpack.c.bf16 %v619, %v618
        %v632 = vpack.c.bf16 %v621, %v620
        %v633 = vpack.c.bf16 %v623, %v622
        %v634 = vpack.c.bf16 %v625, %v624
        %s635 = sld [smem:[#allocation2]]
        %v636 = vstv %s635
        %v638 = vsel %vm488, %v626, 0
        %v641 = vsel %vm488, %v627, 0
        %v644 = vsel %vm488, %v628, 0
        %v647 = vsel %vm488, %v629, 0
        %v650 = vsel %vm488, %v630, 0
        %v653 = vsel %vm488, %v631, 0
        %v656 = vsel %vm488, %v632, 0
        %v659 = vsel %vm488, %v633, 0
        %v662 = vsel %vm488, %v634, 0
        %664 = vmatprep.subr.bf16.mxu0 0
        %665 = vmatpush1.bf16.xpose.msra.mxu0 %v662
        %666 = vmatprep.subr.bf16.mxu0 0
        %667 = vmatpush1.bf16.xpose.msra.mxu0 %v659
        %668 = vmatprep.subr.bf16.mxu0 0
        %669 = vmatpush1.bf16.xpose.msra.mxu0 %v656
        %670 = vmatprep.subr.bf16.mxu0 0
        %671 = vmatpush1.bf16.xpose.msra.mxu0 %v653
        %672 = vmatprep.subr.bf16.mxu0 0
        %673 = vmatpush1.bf16.xpose.msra.mxu0 %v650
        %674 = vmatprep.subr.bf16.mxu0 0
        %675 = vmatpush1.bf16.xpose.msra.mxu0 %v647
        %676 = vmatprep.subr.bf16.mxu0 0
        %677 = vmatpush1.bf16.xpose.msra.mxu0 %v644
        %678 = vmatprep.subr.bf16.mxu0 0
        %679 = vmatpush1.bf16.xpose.msra.mxu0 %v641
        %680 = vmatprep.subr.bf16.mxu0 0
        %681 = vmatpush2.bf16.xpose.msra.mxu0 0
        %682 = vmatprep.subr.bf16.mxu0 0
        %683 = vmatpush2.bf16.xpose.msra.mxu0 0
        %684 = vmatprep.subr.bf16.mxu0 0
        %685 = vmatpush2.bf16.xpose.msra.mxu0 0
        %686 = vmatprep.subr.bf16.mxu0 0
        %687 = vmatpush2.bf16.xpose.msra.mxu0 0
        %688 = vmatprep.subr.bf16.mxu0 0
        %689 = vmatpush2.bf16.xpose.msra.mxu0 0
        %690 = vmatprep.subr.bf16.mxu0 0
        %691 = vmatpush2.bf16.xpose.msra.mxu0 0
        %692 = vmatprep.subr.bf16.mxu0 0
        %693 = vmatpush2.bf16.xpose.msra.mxu0 0
        %694 = vmatprep.subr.bf16.mxu0 0
        %695 = vmatpush2.bf16.xpose.msra.mxu0 0
        %696 = vmatprep.mubr.bf16.mxu0 0
        %697 = vmatmul.mubr.bf16.gmra.mxu0 %v638
        %v698 = vpop.f32.mrf.mxu0
        %v699 = vadd.f32 %v636, %v698
        %v700 = vpop.f32.mrf.mxu0
        %v701 = vpop.f32.mrf.mxu0
        %v702 = vpop.f32.mrf.mxu0
        %703 = vdwg.mxu0
        %704 = vst [vmem:[%s272] sm:$0x1] %v699
        %s705 = sand.u32 %s182, 1
        %s706 = scalar_lea.sflag [#allocation4], %s705
        %s707 = sand.u32 %s182, 1
        %s708 = scalar_lea.vmem [#allocation3], %s707
        // Predicated region
        $region49: #{tpu_custom_call.1} parent=47 // pred_check
          %p709 = pneg %p192
        $region50: #{tpu_custom_call.1} parent=47 // pred_check_branch
          %711 = sbr.rel (%p709) target = $region52
        $region51: #{tpu_custom_call.1} parent=47 // pred_region
          %s713 = ssub.s32 16, 16
          %714 = vsyncadd %s706, %s713
          %s715 = smul.addr %s22, 16
          %s716 = scalar_lea.hbm %s7, %s715
          %s718 = sshll.u32 %s708, 4
          %s719 = int_to_ptr.vmem [resolvable:$true] %s718
          %721 = dma.vmem_to_hbm [thread:$0]  %s719, 16, %s716, %s706
        $region52: #{tpu_custom_call.1} parent=47 // pred_fallthru
          _
      $region48: #{tpu_custom_call.1} parent=5 // pred_fallthru
        _
      %p722 = scmp.le.s32.totalorder 2, %s17
      // Predicated region
      $region53: #{tpu_custom_call.1} parent=5 // pred_check
        %p723 = pneg %p722
      $region54: #{tpu_custom_call.1} parent=5 // pred_check_branch
        %725 = sbr.rel (%p723) target = $region56
      $region55: #{tpu_custom_call.1} parent=5 // pred_region
        %s726 = ssub.s32 %s17, 2
        // Predicated region
        $region57: #{tpu_custom_call.1} parent=55 // pred_check
          %p727 = pneg %p198
        $region58: #{tpu_custom_call.1} parent=55 // pred_check_branch
          %729 = sbr.rel (%p727) target = $region60
        $region59: #{tpu_custom_call.1} parent=55 // pred_region
          %s730 = sand.u32 %s183, 1
          %s731 = scalar_lea.sflag [#allocation4], %s730
          %s732 = sand.u32 %s183, 1
          %s733 = scalar_lea.vmem [#allocation3], %s732
          %734 = dma.done %s731, 16
        $region60: #{tpu_custom_call.1} parent=55 // pred_fallthru
          _
      $region56: #{tpu_custom_call.1} parent=5 // pred_fallthru
        _
    $region6: #{tpu_custom_call.1} parent=1 // loop_footer
      %s21 = sadd.s32 1, %s17
    $region7: #{tpu_custom_call.1} parent=1 // loop_footer_branch
      %16 = sbr.rel target = $region3
    $region8: #{tpu_custom_call.1} parent=1 // loop_exit
      _
    %735 = vsyncpa [#allocation4], 1
    %s736 = scalar_lea.sflag [#allocation4], 1
    %737 = vsyncpa %s736, 1

</llo_original>
